<compile_context>
chip_gen: v7x
topology: tpu7x:2x2x1
jax: 0.10.0
libtpu: 0.0.40
codegen_flags: <defaults>
</compile_context>

<pallas_src>
import jax
import jax.numpy as jnp
from jax.experimental import pallas as pl
from jax.experimental.pallas import tpu as pltpu

TE_DIM = 8        # synthetic time_encoder.out_dim
MAX_TM = 256      # row-tile cap (bounds VMEM use / keeps >=2 grid steps if M grows)


# ----------------------------------------------------------------------------
# Shared math: used verbatim by the Pallas kernel bodies AND by the
# numerics-matched pure-JAX reference (check 1).
# ----------------------------------------------------------------------------
def _dotf(a, b):
    """MXU-friendly dot: bf16 operands, f32 accumulation."""
    return jnp.dot(a.astype(jnp.bfloat16), b.astype(jnp.bfloat16),
                   preferred_element_type=jnp.float32)


def _edge_math(self_f, nbr3, valid3, w1s, w1n, b1, w2, b2, w3, b3):
    """Masked-sum-over-neighbors edge MLP.

    self_f : (TM, Cs)     self / query features (shared by all K neighbors)
    nbr3   : (TM, K, Cn)  gathered neighbor features
    valid3 : (TM, K, 1)   validity mask
    Equivalent to sum_k valid_k * MLP(concat(self, nbr_k)) with
      * concat realised as a split matmul (self part hoisted out of K),
      * the K neighbors batched into the matmul rows (one big LHS),
      * the final W3 matmul folded outside the masked sum.
    """
    tm, k, cn = nbr3.shape
    self_part = _dotf(self_f, w1s) + b1                               # (TM, H1)
    h = _dotf(nbr3.reshape(tm * k, cn), w1n)                          # (TM*K, H1)
    h = jnp.maximum(h.reshape(tm, k, -1) + self_part[:, None, :], 0.0)
    h = jnp.maximum(_dotf(h.reshape(tm * k, -1), w2) + b2, 0.0)       # (TM*K, H2)
    h = h.reshape(tm, k, -1) * valid3                                 # mask narrow hidden
    hsum = jnp.sum(h, axis=1)                                         # (TM, H2)
    vsum = jnp.sum(valid3, axis=1)                                    # (TM, 1)
    return _dotf(hsum, w3) + vsum * b3                                # (TM, Cout)


def _combine_math(key_f, time_nei, wc1k, wc1t, bc1, wc2, bc2, wc3, bc3):
    """Combine MLP on concat(key_feats, space_nei==0, time_nei); the zero block
    and the concat are folded away as a split first-layer matmul."""
    c = jnp.maximum(_dotf(key_f, wc1k) + _dotf(time_nei, wc1t) + bc1, 0.0)
    c = jnp.maximum(_dotf(c, wc2) + bc2, 0.0)
    return _dotf(c, wc3) + bc3


# ----------------------------------------------------------------------------
# Pallas kernels
# ----------------------------------------------------------------------------
def _layer_kernel(self_ref, key_ref, nbr_ref, valid_ref,
                  w1s, w1n, b1, w2, b2, w3, b3,
                  wc1k, wc1t, bc1, wc2, bc2, wc3, bc3, o_ref):
    """One fused encode_input layer: temporal edge conv + masked neighbor sum
    + combine MLP.  time_nei never leaves VMEM/vregs."""
    time_nei = _edge_math(self_ref[...], nbr_ref[...], valid_ref[...],
                          w1s[...], w1n[...], b1[...], w2[...], b2[...],
                          w3[...], b3[...])
    o_ref[...] = _combine_math(key_ref[...], time_nei,
                               wc1k[...], wc1t[...], bc1[...],
                               wc2[...], bc2[...], wc3[...], bc3[...])


def _edge_kernel(self_ref, nbr_ref, valid_ref,
                 w1s, w1n, b1, w2, b2, w3, b3, o_ref):
    """Standalone InteractionNetworkNeighborhood (target conv)."""
    o_ref[...] = _edge_math(self_ref[...], nbr_ref[...], valid_ref[...],
                            w1s[...], w1n[...], b1[...], w2[...], b2[...],
                            w3[...], b3[...])


# ----------------------------------------------------------------------------
# Wrappers
# ----------------------------------------------------------------------------
def _round_up(x, m):
    return ((x + m - 1) // m) * m


def _row_tiling(m):
    """Whole (sublane-padded) batch in one grid step while small; 256-row tiles
    (>= 2 'parallel' steps for dual-TC v7x) once m grows past MAX_TM."""
    mp = _round_up(m, 8)
    if mp <= MAX_TM:
        return mp, mp
    return MAX_TM, _round_up(m, MAX_TM)


def _pad_rows(x, mp):
    m = x.shape[0]
    if m == mp:
        return x
    return jnp.pad(x, [(0, mp - m)] + [(0, 0)] * (x.ndim - 1))


def _wspec(a):
    nd = a.ndim
    return pl.BlockSpec(a.shape, lambda i, _nd=nd: (0,) * _nd)


def _row_spec(tm, *trail):
    nd = 1 + len(trail)
    return pl.BlockSpec((tm,) + trail, lambda i, _nd=nd: (i,) + (0,) * (_nd - 1))


def _prep_edge_weights(edge_p, n_self_used, n_self_total, n_nbr_used):
    """Split W1 into self/neighbor row blocks at trace time (dropping all-zero
    space_nei rows when n_self_used < n_self_total) and cast matmul operands
    to bf16.  Biases stay f32."""
    (w1, b1), (w2, b2), (w3, b3) = edge_p
    bf = jnp.bfloat16
    w1s = w1[:n_self_used].astype(bf)
    w1n = w1[n_self_total:n_self_total + n_nbr_used].astype(bf)
    return (w1s, w1n, b1, w2.astype(bf), b2, w3.astype(bf), b3)


def _prep_combine_weights(comb_p, f, n_sz):
    (w1, b1), (w2, b2), (w3, b3) = comb_p
    bf = jnp.bfloat16
    wc1k = w1[:f].astype(bf)            # key_feats rows
    wc1t = w1[f + n_sz:].astype(bf)     # time_nei rows (skip zero space_nei rows)
    return (wc1k, wc1t, b1, w2.astype(bf), b2, w3.astype(bf), b3)


def layer_apply(self_in, key_feats, nbr, valid, edge_p, comb_p, n_sz):
    """Fused encode_input layer.  self_in: (M, TE+F), key_feats: (M, F),
    nbr: (M, K, TE+F), valid: (M, K)  ->  new key_feats (M, ls)."""
    m, cs = self_in.shape
    _, k, _ = nbr.shape
    f = key_feats.shape[1]
    ew = _prep_edge_weights(edge_p, cs, cs + n_sz, cs)
    cw = _prep_combine_weights(comb_p, f, n_sz)
    ls = comb_p[-1][0].shape[1]
    tm, mp = _row_tiling(m)
    valid3 = valid[:, :, None]
    args = (_pad_rows(self_in, mp), _pad_rows(key_feats, mp),
            _pad_rows(nbr, mp), _pad_rows(valid3, mp)) + ew + cw
    out = pl.pallas_call(
        _layer_kernel,
        out_shape=jax.ShapeDtypeStruct((mp, ls), jnp.float32),
        grid=(mp // tm,),
        in_specs=[_row_spec(tm, cs), _row_spec(tm, f),
                  _row_spec(tm, k, cs), _row_spec(tm, k, 1)]
                 + [_wspec(a) for a in ew + cw],
        out_specs=_row_spec(tm, ls),
        compiler_params=pltpu.CompilerParams(dimension_semantics=("parallel",)),
    )(*args)
    return out[:m]


def edge_apply(self_feats, nbr, valid, edge_p):
    """Target conv (key_feats='query'): edge MLP + mask + sum over neighbors.
    self_feats: (M, Cq), nbr: (M, K, Cn), valid: (M, K) -> (M, Cout)."""
    m, cs = self_feats.shape
    _, k, cn = nbr.shape
    ew = _prep_edge_weights(edge_p, cs, cs, cn)
    cout = edge_p[-1][0].shape[1]
    tm, mp = _row_tiling(m)
    valid3 = valid[:, :, None]
    args = (_pad_rows(self_feats, mp), _pad_rows(nbr, mp), _pad_rows(valid3, mp)) + ew
    out = pl.pallas_call(
        _edge_kernel,
        out_shape=jax.ShapeDtypeStruct((mp, cout), jnp.float32),
        grid=(mp // tm,),
        in_specs=[_row_spec(tm, cs), _row_spec(tm, k, cn), _row_spec(tm, k, 1)]
                 + [_wspec(a) for a in ew],
        out_specs=_row_spec(tm, cout),
        compiler_params=pltpu.CompilerParams(dimension_semantics=("parallel",)),
    )(*args)
    return out[:m]


# ----------------------------------------------------------------------------
# Numerics-matched pure-JAX references (validate the Pallas machinery)
# ----------------------------------------------------------------------------
def layer_apply_ref(self_in, key_feats, nbr, valid, edge_p, comb_p, n_sz):
    cs = self_in.shape[1]
    f = key_feats.shape[1]
    ew = _prep_edge_weights(edge_p, cs, cs + n_sz, cs)
    cw = _prep_combine_weights(comb_p, f, n_sz)
    t_nei = _edge_math(self_in, nbr, valid[:, :, None], *ew)
    return _combine_math(key_feats, t_nei, *cw)


def edge_apply_ref(self_feats, nbr, valid, edge_p):
    cs = self_feats.shape[1]
    cn = nbr.shape[-1]
    ew = _prep_edge_weights(edge_p, cs, cs, cn)
    return _edge_math(self_feats, nbr, valid[:, :, None], *ew)


# ----------------------------------------------------------------------------
# Module-semantics references (original concat / unfolded masked sum, f32
# HIGHEST precision) — validate the algebraic rearrangements.
# ----------------------------------------------------------------------------
def _mlp_module_ref(x, params):
    hp = jax.lax.Precision.HIGHEST
    (w1, b1), (w2, b2), (w3, b3) = params
    h = jnp.maximum(jnp.dot(x, w1, precision=hp) + b1, 0.0)
    h = jnp.maximum(jnp.dot(h, w2, precision=hp) + b2, 0.0)
    return jnp.dot(h, w3, precision=hp) + b3


def _edge_module_ref(self_feats, nbr, valid, params):
    m, k, _ = nbr.shape
    exp = jnp.broadcast_to(self_feats[:, None, :], (m, k, self_feats.shape[1]))
    edges = _mlp_module_ref(jnp.concatenate([exp, nbr], axis=-1), params)
    return jnp.sum(edges * valid[..., None], axis=1)


def layer_module_ref(self_in, key_feats, nbr, valid, edge_p, comb_p, n_sz):
    m, k, _ = nbr.shape
    z2 = jnp.zeros((m, n_sz), jnp.float32)
    z3 = jnp.zeros((m, k, n_sz), jnp.float32)
    t_nei = _edge_module_ref(jnp.concatenate([self_in, z2], axis=-1),
                             jnp.concatenate([nbr, z3], axis=-1), valid, edge_p)
    combined = jnp.concatenate([key_feats, z2, t_nei], axis=-1)
    return _mlp_module_ref(combined, comb_p)


def edge_module_ref(self_feats, nbr, valid, edge_p):
    return _edge_module_ref(self_feats, nbr, valid, edge_p)


# ----------------------------------------------------------------------------
# Plain-JAX glue: time encoder, gather, parameters, module forward
# ----------------------------------------------------------------------------
def time_encode(t):
    """Synthetic sinusoidal time encoder, out_dim = TE_DIM."""
    half = TE_DIM // 2
    freqs = 2.0 ** jnp.arange(half, dtype=jnp.float32)
    ang = t[..., None].astype(jnp.float32) * freqs
    return jnp.concatenate([jnp.sin(ang), jnp.cos(ang)], axis=-1)


def gather_neighbors(feats, idxs):
    """feats: (B, N, C), idxs: (B, Nq, K) -> (B, Nq, K, C)  (== feats[bb, n_idxs])."""
    return jax.vmap(lambda f, i: f[i])(feats, idxs)


def init_mlp(key, sizes):
    params = []
    for i in range(len(sizes) - 1):
        key, kw, kb = jax.random.split(key, 3)
        w = (jax.random.normal(kw, (sizes[i], sizes[i + 1]), jnp.float32)
             / jnp.sqrt(float(sizes[i])))
        b = 0.01 * jax.random.normal(kb, (1, sizes[i + 1]), jnp.float32)
        params.append((w, b))
    return params


def make_params(key, feat_size, edge_hidden, latent_sizes, neighborhood_sizes,
                combine_hidden, target_size):
    time_convs, combine_mlps = [], []
    in_size = feat_size
    for ls, n_sz in zip(latent_sizes, neighborhood_sizes):
        c_in = in_size + n_sz + TE_DIM
        key, k1, k2 = jax.random.split(key, 3)
        # key_feats='self' -> in_sz = 2 * c_in
        time_convs.append(init_mlp(k1, [2 * c_in] + list(edge_hidden) + [n_sz]))
        combine_mlps.append(init_mlp(k2, [in_size + 2 * n_sz] + list(combine_hidden) + [ls]))
        in_size = ls
    # target conv: key_feats='query', query_type='time' -> query_dim = TE_DIM
    c_in = latent_sizes[-1] + TE_DIM
    key, k3 = jax.random.split(key)
    target_conv = init_mlp(k3, [c_in + TE_DIM] + [2 * x for x in edge_hidden] + [target_size])
    return {"n_sizes": list(neighborhood_sizes), "time_convs": time_convs,
            "combine_mlps": combine_mlps, "target_conv": target_conv}


def tint_forward(params, data, time_pts, query_pts, time_dist_data,
                 target_dist_data, layer_fn, target_fn):
    """TemporalInteraction.forward with query_type='time'; the spatial
    neighborhoods contribute zeros (no space_dist_data), and those zero
    columns are folded out of the matmuls.  ids / space_pts unused here."""
    # TODO(synk): calc_neighbor_info / dist_fn KNN search and the spatial
    # (space_convs) branch require externally supplied dist_data; this models
    # the temporal-only configuration where space_nei == 0.
    b, t, _ = data.shape
    key_feats = data
    enc_tp = time_encode(time_pts)                        # (B, T, TE)
    t_idxs, _, t_valid = time_dist_data
    k = t_idxs.shape[-1]
    tv = t_valid.reshape(b * t, k).astype(jnp.float32)

    # encode_input: one fused (temporal edge conv + combine MLP) call per layer
    for n_sz, edge_p, comb_p in zip(params["n_sizes"], params["time_convs"],
                                    params["combine_mlps"]):
        time_in = jnp.concatenate([enc_tp, key_feats], axis=2)   # zero space_nei dropped
        nbr = gather_neighbors(time_in, t_idxs)                  # (B, T, K, TE+F)
        c = time_in.shape[-1]
        f = key_feats.shape[-1]
        key_feats = layer_fn(time_in.reshape(b * t, c),
                             key_feats.reshape(b * t, f),
                             nbr.reshape(b * t, k, c),
                             tv, edge_p, comb_p, n_sz).reshape(b, t, -1)

    # encode_queries (query_type='time': keys are time_encode(query_pts))
    target_in = jnp.concatenate([enc_tp, key_feats], axis=-1)    # (B, T, TE+ls)
    q_idxs, _, q_valid = target_dist_data
    q = query_pts.shape[1]
    kq = q_idxs.shape[-1]
    enc_q = time_encode(query_pts)                               # (B, Q, TE)
    nbr = gather_neighbors(target_in, q_idxs)                    # (B, Q, Kq, C)
    c = target_in.shape[-1]
    out = target_fn(enc_q.reshape(b * q, -1),
                    nbr.reshape(b * q, kq, c),
                    q_valid.reshape(b * q, kq).astype(jnp.float32),
                    params["target_conv"])
    return out.reshape(b, q, -1)


# ----------------------------------------------------------------------------
if __name__ == "__main__":
    # Module hyper-parameters (small, consistent with the PyTorch constructor)
    feat_size = 6
    edge_hidden = [16, 16]
    latent_sizes = [12, 10]
    neighborhood_sizes = [8, 8]
    timesteps = 8          # T; also K for every neighborhood (neighbors=timesteps)
    combine_hidden = [16, 16]
    target_size = 10
    B, T, Q, K = 2, timesteps, 4, timesteps

    root = jax.random.PRNGKey(0)
    k_par, k_data, k_tp, k_qp, k_ti, k_tv, k_qi, k_qv = jax.random.split(root, 8)

    params = make_params(k_par, feat_size, edge_hidden, latent_sizes,
                         neighborhood_sizes, combine_hidden, target_size)

    data = jax.random.normal(k_data, (B, T, feat_size), jnp.float32)
    time_pts = jax.random.uniform(k_tp, (B, T), jnp.float32)
    query_pts = jax.random.uniform(k_qp, (B, Q), jnp.float32)

    # Precomputed dist_data tuples: (n_idxs, neighbor_rel(unused), neighbor_valid)
    time_n_idxs = jax.random.randint(k_ti, (B, T, K), 0, T)
    time_valid = (jax.random.uniform(k_tv, (B, T, K)) > 0.2).astype(jnp.float32)
    tgt_n_idxs = jax.random.randint(k_qi, (B, Q, K), 0, T)
    tgt_valid = (jax.random.uniform(k_qv, (B, Q, K)) > 0.2).astype(jnp.float32)
    time_dist_data = (time_n_idxs, None, time_valid)
    target_dist_data = (tgt_n_idxs, None, tgt_valid)

    out = tint_forward(params, data, time_pts, query_pts,
                       time_dist_data, target_dist_data,
                       layer_fn=layer_apply, target_fn=edge_apply)
    out = jax.block_until_ready(out)
    assert out.shape == (B, Q, target_size), out.shape

    # Check 1: Pallas kernels vs a pure-JAX reference with identical numerics
    # (same bf16 operand placement / split-matmul arrangement) -- validates the
    # pallas_call plumbing (tiling, padding, reshapes, BlockSpecs).
    ref_m = tint_forward(params, data, time_pts, query_pts,
                         time_dist_data, target_dist_data,
                         layer_fn=layer_apply_ref, target_fn=edge_apply_ref)
    assert jnp.allclose(out, ref_m, rtol=1e-3, atol=1e-3), \
        float(jnp.max(jnp.abs(out - ref_m)))

    # Check 2: vs the original-module math (full concat, unfolded masked sum,
    # f32 HIGHEST precision) -- validates the algebraic rearrangements; loose
    # relative-Frobenius threshold accounts for the bf16 MXU operands.
    ref_f = tint_forward(params, data, time_pts, query_pts,
                         time_dist_data, target_dist_data,
                         layer_fn=layer_module_ref, target_fn=edge_module_ref)
    rel = jnp.linalg.norm(out - ref_f) / (jnp.linalg.norm(ref_f) + 1e-6)
    assert float(rel) < 0.1, float(rel)

    print("KERNEL_OK")
</pallas_src>

<mosaic_0001>
module attributes {stable_mosaic.version = 11 : i64} {
  func.func @_layer_kernel(%arg0: i32, %arg1: memref<16x14xf32, #tpu.memory_space<vmem>>, %arg2: memref<16x6xf32, #tpu.memory_space<vmem>>, %arg3: memref<16x8x14xf32, #tpu.memory_space<vmem>>, %arg4: memref<16x8x1xf32, #tpu.memory_space<vmem>>, %arg5: memref<14x16xbf16, #tpu.memory_space<vmem>>, %arg6: memref<14x16xbf16, #tpu.memory_space<vmem>>, %arg7: memref<1x16xf32, #tpu.memory_space<vmem>>, %arg8: memref<16x16xbf16, #tpu.memory_space<vmem>>, %arg9: memref<1x16xf32, #tpu.memory_space<vmem>>, %arg10: memref<16x8xbf16, #tpu.memory_space<vmem>>, %arg11: memref<1x8xf32, #tpu.memory_space<vmem>>, %arg12: memref<6x16xbf16, #tpu.memory_space<vmem>>, %arg13: memref<8x16xbf16, #tpu.memory_space<vmem>>, %arg14: memref<1x16xf32, #tpu.memory_space<vmem>>, %arg15: memref<16x16xbf16, #tpu.memory_space<vmem>>, %arg16: memref<1x16xf32, #tpu.memory_space<vmem>>, %arg17: memref<16x12xbf16, #tpu.memory_space<vmem>>, %arg18: memref<1x12xf32, #tpu.memory_space<vmem>>, %arg19: memref<16x12xf32, #tpu.memory_space<vmem>>) attributes {dimension_semantics = [#tpu.dimension_semantics<parallel>], iteration_bounds = array<i64: 1>, scalar_prefetch = 0 : i64, scratch_operands = 0 : i64, tpu.core_type = #tpu.core_type<tc>, window_params = [{transform_indices = @transform_0, window_bounds = array<i64: 16, 14>}, {transform_indices = @transform_1, window_bounds = array<i64: 16, 6>}, {transform_indices = @transform_2, window_bounds = array<i64: 16, 8, 14>}, {transform_indices = @transform_3, window_bounds = array<i64: 16, 8, 1>}, {pipeline_mode = #tpu.pipeline_mode<synchronous>, transform_indices = @transform_4, window_bounds = array<i64: 14, 16>}, {pipeline_mode = #tpu.pipeline_mode<synchronous>, transform_indices = @transform_5, window_bounds = array<i64: 14, 16>}, {pipeline_mode = #tpu.pipeline_mode<synchronous>, transform_indices = @transform_6, window_bounds = array<i64: 1, 16>}, {pipeline_mode = #tpu.pipeline_mode<synchronous>, transform_indices = @transform_7, window_bounds = array<i64: 16, 16>}, {pipeline_mode = #tpu.pipeline_mode<synchronous>, transform_indices = @transform_8, window_bounds = array<i64: 1, 16>}, {pipeline_mode = #tpu.pipeline_mode<synchronous>, transform_indices = @transform_9, window_bounds = array<i64: 16, 8>}, {pipeline_mode = #tpu.pipeline_mode<synchronous>, transform_indices = @transform_10, window_bounds = array<i64: 1, 8>}, {pipeline_mode = #tpu.pipeline_mode<synchronous>, transform_indices = @transform_11, window_bounds = array<i64: 6, 16>}, {pipeline_mode = #tpu.pipeline_mode<synchronous>, transform_indices = @transform_12, window_bounds = array<i64: 8, 16>}, {pipeline_mode = #tpu.pipeline_mode<synchronous>, transform_indices = @transform_13, window_bounds = array<i64: 1, 16>}, {pipeline_mode = #tpu.pipeline_mode<synchronous>, transform_indices = @transform_14, window_bounds = array<i64: 16, 16>}, {pipeline_mode = #tpu.pipeline_mode<synchronous>, transform_indices = @transform_15, window_bounds = array<i64: 1, 16>}, {pipeline_mode = #tpu.pipeline_mode<synchronous>, transform_indices = @transform_16, window_bounds = array<i64: 16, 12>}, {pipeline_mode = #tpu.pipeline_mode<synchronous>, transform_indices = @transform_17, window_bounds = array<i64: 1, 12>}, {transform_indices = @transform_18, window_bounds = array<i64: 16, 12>}]} {
    %c0 = arith.constant 0 : index
    %c0_0 = arith.constant 0 : index
    %0 = vector.load %arg1[%c0, %c0_0] : memref<16x14xf32, #tpu.memory_space<vmem>>, vector<16x14xf32>
    %c0_1 = arith.constant 0 : index
    %c0_2 = arith.constant 0 : index
    %c0_3 = arith.constant 0 : index
    %1 = vector.load %arg3[%c0_1, %c0_2, %c0_3] : memref<16x8x14xf32, #tpu.memory_space<vmem>>, vector<16x8x14xf32>
    %c0_4 = arith.constant 0 : index
    %c0_5 = arith.constant 0 : index
    %c0_6 = arith.constant 0 : index
    %2 = vector.load %arg4[%c0_4, %c0_5, %c0_6] : memref<16x8x1xf32, #tpu.memory_space<vmem>>, vector<16x8x1xf32>
    %c0_7 = arith.constant 0 : index
    %c0_8 = arith.constant 0 : index
    %3 = vector.load %arg5[%c0_7, %c0_8] : memref<14x16xbf16, #tpu.memory_space<vmem>>, vector<14x16xbf16>
    %c0_9 = arith.constant 0 : index
    %c0_10 = arith.constant 0 : index
    %4 = vector.load %arg6[%c0_9, %c0_10] : memref<14x16xbf16, #tpu.memory_space<vmem>>, vector<14x16xbf16>
    %c0_11 = arith.constant 0 : index
    %c0_12 = arith.constant 0 : index
    %5 = vector.load %arg7[%c0_11, %c0_12] : memref<1x16xf32, #tpu.memory_space<vmem>>, vector<1x16xf32>
    %c0_13 = arith.constant 0 : index
    %c0_14 = arith.constant 0 : index
    %6 = vector.load %arg8[%c0_13, %c0_14] : memref<16x16xbf16, #tpu.memory_space<vmem>>, vector<16x16xbf16>
    %c0_15 = arith.constant 0 : index
    %c0_16 = arith.constant 0 : index
    %7 = vector.load %arg9[%c0_15, %c0_16] : memref<1x16xf32, #tpu.memory_space<vmem>>, vector<1x16xf32>
    %c0_17 = arith.constant 0 : index
    %c0_18 = arith.constant 0 : index
    %8 = vector.load %arg10[%c0_17, %c0_18] : memref<16x8xbf16, #tpu.memory_space<vmem>>, vector<16x8xbf16>
    %c0_19 = arith.constant 0 : index
    %c0_20 = arith.constant 0 : index
    %9 = vector.load %arg11[%c0_19, %c0_20] : memref<1x8xf32, #tpu.memory_space<vmem>>, vector<1x8xf32>
    %10 = arith.truncf %0 : vector<16x14xf32> to vector<16x14xbf16>
    %cst = arith.constant dense<0.000000e+00> : vector<16x16xf32>
    %11 = tpu.matmul %10, %3, %cst {dimension_numbers = #tpu.dot_dimension_numbers<[1], [0], [0], [1], [0, 0, 1, 1], [], []>} : vector<16x14xbf16>, vector<14x16xbf16>, vector<16x16xf32> -> vector<16x16xf32>
    %12 = vector.broadcast %5 : vector<1x16xf32> to vector<16x16xf32>
    %13 = arith.addf %11, %12 : vector<16x16xf32>
    %14 = vector.shape_cast %1 : vector<16x8x14xf32> to vector<128x14xf32>
    %15 = arith.truncf %14 : vector<128x14xf32> to vector<128x14xbf16>
    %cst_21 = arith.constant dense<0.000000e+00> : vector<128x16xf32>
    %16 = tpu.matmul %15, %4, %cst_21 {dimension_numbers = #tpu.dot_dimension_numbers<[1], [0], [0], [1], [0, 0, 1, 1], [], []>} : vector<128x14xbf16>, vector<14x16xbf16>, vector<128x16xf32> -> vector<128x16xf32>
    %17 = vector.shape_cast %16 : vector<128x16xf32> to vector<16x8x16xf32>
    %18 = vector.shape_cast %13 : vector<16x16xf32> to vector<16x1x16xf32>
    %19 = vector.broadcast %18 : vector<16x1x16xf32> to vector<16x8x16xf32>
    %20 = arith.addf %17, %19 : vector<16x8x16xf32>
    %cst_22 = arith.constant 0.000000e+00 : f32
    %21 = vector.broadcast %cst_22 : f32 to vector<16x8x16xf32>
    %22 = arith.maximumf %20, %21 : vector<16x8x16xf32>
    %23 = vector.shape_cast %22 : vector<16x8x16xf32> to vector<128x16xf32>
    %24 = arith.truncf %23 : vector<128x16xf32> to vector<128x16xbf16>
    %cst_23 = arith.constant dense<0.000000e+00> : vector<128x16xf32>
    %25 = tpu.matmul %24, %6, %cst_23 {dimension_numbers = #tpu.dot_dimension_numbers<[1], [0], [0], [1], [0, 0, 1, 1], [], []>} : vector<128x16xbf16>, vector<16x16xbf16>, vector<128x16xf32> -> vector<128x16xf32>
    %26 = vector.broadcast %7 : vector<1x16xf32> to vector<128x16xf32>
    %27 = arith.addf %25, %26 : vector<128x16xf32>
    %cst_24 = arith.constant 0.000000e+00 : f32
    %28 = vector.broadcast %cst_24 : f32 to vector<128x16xf32>
    %29 = arith.maximumf %27, %28 : vector<128x16xf32>
    %30 = vector.shape_cast %29 : vector<128x16xf32> to vector<16x8x16xf32>
    %31 = vector.broadcast %2 : vector<16x8x1xf32> to vector<16x8x16xf32>
    %32 = arith.mulf %30, %31 : vector<16x8x16xf32>
    %cst_25 = arith.constant dense<0.000000e+00> : vector<16x16xf32>
    %33 = vector.multi_reduction <add>, %32, %cst_25 [1] : vector<16x8x16xf32> to vector<16x16xf32>
    %cst_26 = arith.constant dense<0.000000e+00> : vector<16x1xf32>
    %34 = vector.multi_reduction <add>, %2, %cst_26 [1] : vector<16x8x1xf32> to vector<16x1xf32>
    %35 = arith.truncf %33 : vector<16x16xf32> to vector<16x16xbf16>
    %cst_27 = arith.constant dense<0.000000e+00> : vector<16x8xf32>
    %36 = tpu.matmul %35, %8, %cst_27 {dimension_numbers = #tpu.dot_dimension_numbers<[1], [0], [0], [1], [0, 0, 1, 1], [], []>} : vector<16x16xbf16>, vector<16x8xbf16>, vector<16x8xf32> -> vector<16x8xf32>
    %37 = vector.broadcast %34 : vector<16x1xf32> to vector<16x8xf32>
    %38 = vector.broadcast %9 : vector<1x8xf32> to vector<16x8xf32>
    %39 = arith.mulf %37, %38 : vector<16x8xf32>
    %40 = arith.addf %36, %39 : vector<16x8xf32>
    %c0_28 = arith.constant 0 : index
    %c0_29 = arith.constant 0 : index
    %41 = vector.load %arg2[%c0_28, %c0_29] : memref<16x6xf32, #tpu.memory_space<vmem>>, vector<16x6xf32>
    %c0_30 = arith.constant 0 : index
    %c0_31 = arith.constant 0 : index
    %42 = vector.load %arg12[%c0_30, %c0_31] : memref<6x16xbf16, #tpu.memory_space<vmem>>, vector<6x16xbf16>
    %c0_32 = arith.constant 0 : index
    %c0_33 = arith.constant 0 : index
    %43 = vector.load %arg13[%c0_32, %c0_33] : memref<8x16xbf16, #tpu.memory_space<vmem>>, vector<8x16xbf16>
    %c0_34 = arith.constant 0 : index
    %c0_35 = arith.constant 0 : index
    %44 = vector.load %arg14[%c0_34, %c0_35] : memref<1x16xf32, #tpu.memory_space<vmem>>, vector<1x16xf32>
    %c0_36 = arith.constant 0 : index
    %c0_37 = arith.constant 0 : index
    %45 = vector.load %arg15[%c0_36, %c0_37] : memref<16x16xbf16, #tpu.memory_space<vmem>>, vector<16x16xbf16>
    %c0_38 = arith.constant 0 : index
    %c0_39 = arith.constant 0 : index
    %46 = vector.load %arg16[%c0_38, %c0_39] : memref<1x16xf32, #tpu.memory_space<vmem>>, vector<1x16xf32>
    %c0_40 = arith.constant 0 : index
    %c0_41 = arith.constant 0 : index
    %47 = vector.load %arg17[%c0_40, %c0_41] : memref<16x12xbf16, #tpu.memory_space<vmem>>, vector<16x12xbf16>
    %c0_42 = arith.constant 0 : index
    %c0_43 = arith.constant 0 : index
    %48 = vector.load %arg18[%c0_42, %c0_43] : memref<1x12xf32, #tpu.memory_space<vmem>>, vector<1x12xf32>
    %49 = arith.truncf %41 : vector<16x6xf32> to vector<16x6xbf16>
    %cst_44 = arith.constant dense<0.000000e+00> : vector<16x16xf32>
    %50 = tpu.matmul %49, %42, %cst_44 {dimension_numbers = #tpu.dot_dimension_numbers<[1], [0], [0], [1], [0, 0, 1, 1], [], []>} : vector<16x6xbf16>, vector<6x16xbf16>, vector<16x16xf32> -> vector<16x16xf32>
    %51 = arith.truncf %40 : vector<16x8xf32> to vector<16x8xbf16>
    %cst_45 = arith.constant dense<0.000000e+00> : vector<16x16xf32>
    %52 = tpu.matmul %51, %43, %cst_45 {dimension_numbers = #tpu.dot_dimension_numbers<[1], [0], [0], [1], [0, 0, 1, 1], [], []>} : vector<16x8xbf16>, vector<8x16xbf16>, vector<16x16xf32> -> vector<16x16xf32>
    %53 = arith.addf %50, %52 : vector<16x16xf32>
    %54 = vector.broadcast %44 : vector<1x16xf32> to vector<16x16xf32>
    %55 = arith.addf %53, %54 : vector<16x16xf32>
    %cst_46 = arith.constant 0.000000e+00 : f32
    %56 = vector.broadcast %cst_46 : f32 to vector<16x16xf32>
    %57 = arith.maximumf %55, %56 : vector<16x16xf32>
    %58 = arith.truncf %57 : vector<16x16xf32> to vector<16x16xbf16>
    %cst_47 = arith.constant dense<0.000000e+00> : vector<16x16xf32>
    %59 = tpu.matmul %58, %45, %cst_47 {dimension_numbers = #tpu.dot_dimension_numbers<[1], [0], [0], [1], [0, 0, 1, 1], [], []>} : vector<16x16xbf16>, vector<16x16xbf16>, vector<16x16xf32> -> vector<16x16xf32>
    %60 = vector.broadcast %46 : vector<1x16xf32> to vector<16x16xf32>
    %61 = arith.addf %59, %60 : vector<16x16xf32>
    %cst_48 = arith.constant 0.000000e+00 : f32
    %62 = vector.broadcast %cst_48 : f32 to vector<16x16xf32>
    %63 = arith.maximumf %61, %62 : vector<16x16xf32>
    %64 = arith.truncf %63 : vector<16x16xf32> to vector<16x16xbf16>
    %cst_49 = arith.constant dense<0.000000e+00> : vector<16x12xf32>
    %65 = tpu.matmul %64, %47, %cst_49 {dimension_numbers = #tpu.dot_dimension_numbers<[1], [0], [0], [1], [0, 0, 1, 1], [], []>} : vector<16x16xbf16>, vector<16x12xbf16>, vector<16x12xf32> -> vector<16x12xf32>
    %66 = vector.broadcast %48 : vector<1x12xf32> to vector<16x12xf32>
    %67 = arith.addf %65, %66 : vector<16x12xf32>
    %c0_50 = arith.constant 0 : index
    %c0_51 = arith.constant 0 : index
    %68 = vector.load %arg19[%c0_50, %c0_51] : memref<16x12xf32, #tpu.memory_space<vmem>>, vector<16x12xf32>
    tpu.vector_store %arg19[%c0_50, %c0_51], %67 {strides = array<i32>} : memref<16x12xf32, #tpu.memory_space<vmem>>, vector<16x12xf32>,
    return
  }
  func.func @transform_0(%arg0: i32) -> (i32, i32) {
    %c0_i32 = arith.constant 0 : i32
    %c0_i32_0 = arith.constant 0 : i32
    return %arg0, %c0_i32 : i32, i32
  }
  func.func @transform_1(%arg0: i32) -> (i32, i32) {
    %c0_i32 = arith.constant 0 : i32
    %c0_i32_0 = arith.constant 0 : i32
    return %arg0, %c0_i32 : i32, i32
  }
  func.func @transform_2(%arg0: i32) -> (i32, i32, i32) {
    %c0_i32 = arith.constant 0 : i32
    %c0_i32_0 = arith.constant 0 : i32
    %c0_i32_1 = arith.constant 0 : i32
    return %arg0, %c0_i32, %c0_i32_0 : i32, i32, i32
  }
  func.func @transform_3(%arg0: i32) -> (i32, i32, i32) {
    %c0_i32 = arith.constant 0 : i32
    %c0_i32_0 = arith.constant 0 : i32
    %c0_i32_1 = arith.constant 0 : i32
    return %arg0, %c0_i32, %c0_i32_0 : i32, i32, i32
  }
  func.func @transform_4(%arg0: i32) -> (i32, i32) {
    %c0_i32 = arith.constant 0 : i32
    %c0_i32_0 = arith.constant 0 : i32
    %c0_i32_1 = arith.constant 0 : i32
    return %c0_i32, %c0_i32_0 : i32, i32
  }
  func.func @transform_5(%arg0: i32) -> (i32, i32) {
    %c0_i32 = arith.constant 0 : i32
    %c0_i32_0 = arith.constant 0 : i32
    %c0_i32_1 = arith.constant 0 : i32
    return %c0_i32, %c0_i32_0 : i32, i32
  }
  func.func @transform_6(%arg0: i32) -> (i32, i32) {
    %c0_i32 = arith.constant 0 : i32
    %c0_i32_0 = arith.constant 0 : i32
    %c0_i32_1 = arith.constant 0 : i32
    return %c0_i32, %c0_i32_0 : i32, i32
  }
  func.func @transform_7(%arg0: i32) -> (i32, i32) {
    %c0_i32 = arith.constant 0 : i32
    %c0_i32_0 = arith.constant 0 : i32
    %c0_i32_1 = arith.constant 0 : i32
    return %c0_i32, %c0_i32_0 : i32, i32
  }
  func.func @transform_8(%arg0: i32) -> (i32, i32) {
    %c0_i32 = arith.constant 0 : i32
    %c0_i32_0 = arith.constant 0 : i32
    %c0_i32_1 = arith.constant 0 : i32
    return %c0_i32, %c0_i32_0 : i32, i32
  }
  func.func @transform_9(%arg0: i32) -> (i32, i32) {
    %c0_i32 = arith.constant 0 : i32
    %c0_i32_0 = arith.constant 0 : i32
    %c0_i32_1 = arith.constant 0 : i32
    return %c0_i32, %c0_i32_0 : i32, i32
  }
  func.func @transform_10(%arg0: i32) -> (i32, i32) {
    %c0_i32 = arith.constant 0 : i32
    %c0_i32_0 = arith.constant 0 : i32
    %c0_i32_1 = arith.constant 0 : i32
    return %c0_i32, %c0_i32_0 : i32, i32
  }
  func.func @transform_11(%arg0: i32) -> (i32, i32) {
    %c0_i32 = arith.constant 0 : i32
    %c0_i32_0 = arith.constant 0 : i32
    %c0_i32_1 = arith.constant 0 : i32
    return %c0_i32, %c0_i32_0 : i32, i32
  }
  func.func @transform_12(%arg0: i32) -> (i32, i32) {
    %c0_i32 = arith.constant 0 : i32
    %c0_i32_0 = arith.constant 0 : i32
    %c0_i32_1 = arith.constant 0 : i32
    return %c0_i32, %c0_i32_0 : i32, i32
  }
  func.func @transform_13(%arg0: i32) -> (i32, i32) {
    %c0_i32 = arith.constant 0 : i32
    %c0_i32_0 = arith.constant 0 : i32
    %c0_i32_1 = arith.constant 0 : i32
    return %c0_i32, %c0_i32_0 : i32, i32
  }
  func.func @transform_14(%arg0: i32) -> (i32, i32) {
    %c0_i32 = arith.constant 0 : i32
    %c0_i32_0 = arith.constant 0 : i32
    %c0_i32_1 = arith.constant 0 : i32
    return %c0_i32, %c0_i32_0 : i32, i32
  }
  func.func @transform_15(%arg0: i32) -> (i32, i32) {
    %c0_i32 = arith.constant 0 : i32
    %c0_i32_0 = arith.constant 0 : i32
    %c0_i32_1 = arith.constant 0 : i32
    return %c0_i32, %c0_i32_0 : i32, i32
  }
  func.func @transform_16(%arg0: i32) -> (i32, i32) {
    %c0_i32 = arith.constant 0 : i32
    %c0_i32_0 = arith.constant 0 : i32
    %c0_i32_1 = arith.constant 0 : i32
    return %c0_i32, %c0_i32_0 : i32, i32
  }
  func.func @transform_17(%arg0: i32) -> (i32, i32) {
    %c0_i32 = arith.constant 0 : i32
    %c0_i32_0 = arith.constant 0 : i32
    %c0_i32_1 = arith.constant 0 : i32
    return %c0_i32, %c0_i32_0 : i32, i32
  }
  func.func @transform_18(%arg0: i32) -> (i32, i32) {
    %c0_i32 = arith.constant 0 : i32
    %c0_i32_0 = arith.constant 0 : i32
    return %arg0, %c0_i32 : i32, i32
  }
}

</mosaic_0001>

<llo_original>
// kernel: tpu_custom_call.1
$region0: #{tpu_custom_call.1}
  #allocation0 [shape = 'u32[]', space=smem, size = 0x4, offset = 0x4, fixed_abs, tag = 'smem constant byte address 0x4 - core index']
  #allocation1 [shape = 'u32[144,128]{1,0:T(1,128)}', space=vmem, size = 0x12000, scoped, tag = 'internal scratch']
  %s0 = inlined_call_operand.vmem [shape: f32[16,14], index: 0, kind: input, shape index: {}]
  %s1 = inlined_call_operand.vmem [shape: f32[16,6], index: 1, kind: input, shape index: {}]
  %s2 = inlined_call_operand.vmem [shape: f32[16,8,14], index: 2, kind: input, shape index: {}]
  %s3 = inlined_call_operand.vmem [shape: f32[16,8,1], index: 3, kind: input, shape index: {}]
  %s4 = inlined_call_operand.vmem [shape: bf16[14,16], index: 4, kind: input, shape index: {}]
  %s5 = inlined_call_operand.vmem [shape: bf16[14,16], index: 5, kind: input, shape index: {}]
  %s6 = inlined_call_operand.vmem [shape: f32[1,16], index: 6, kind: input, shape index: {}]
  %s7 = inlined_call_operand.vmem [shape: bf16[16,16], index: 7, kind: input, shape index: {}]
  %s8 = inlined_call_operand.vmem [shape: f32[1,16], index: 8, kind: input, shape index: {}]
  %s9 = inlined_call_operand.vmem [shape: bf16[16,8], index: 9, kind: input, shape index: {}]
  %s10 = inlined_call_operand.vmem [shape: f32[1,8], index: 10, kind: input, shape index: {}]
  %s11 = inlined_call_operand.vmem [shape: bf16[6,16], index: 11, kind: input, shape index: {}]
  %s12 = inlined_call_operand.vmem [shape: bf16[8,16], index: 12, kind: input, shape index: {}]
  %s13 = inlined_call_operand.vmem [shape: f32[1,16], index: 13, kind: input, shape index: {}]
  %s14 = inlined_call_operand.vmem [shape: bf16[16,16], index: 14, kind: input, shape index: {}]
  %s15 = inlined_call_operand.vmem [shape: f32[1,16], index: 15, kind: input, shape index: {}]
  %s16 = inlined_call_operand.vmem [shape: bf16[16,12], index: 16, kind: input, shape index: {}]
  %s17 = inlined_call_operand.vmem [shape: f32[1,12], index: 17, kind: input, shape index: {}]
  %s18 = inlined_call_operand.hbm [shape: f32[16,12], index: 18, kind: output, shape index: {}]
  %s19 = sld [smem:[#allocation0]]
  $region82: #{tpu_custom_call.1} parent=0
    _
  %s21 = ssub.s32 1, %s19
  %s22 = scalar_select 0, %s21, %s19
  $region1: #{tpu_custom_call.1} parent=0
    #allocation2 [shape = 'u8[8192]{0}', space=vmem, size = 0x2000, scoped, tag = 'output window, operand 0, single buffered']
    #allocation3 [shape = 's32[1]{0}', space=sflag, size = 0x4, scoped, tag = 'scoped memory for tpu_custom_call.1']
    %23 = vsyncpa [#allocation3], 0
    // Predicated region
    $region2: #{tpu_custom_call.1} parent=1 // pred_check
      _
    $region3: #{tpu_custom_call.1} parent=1 // pred_check_branch
      %25 = sbr.rel (0) target = $region5
    $region4: #{tpu_custom_call.1} parent=1 // pred_region
      _
    $region5: #{tpu_custom_call.1} parent=1 // pred_fallthru
      _
    // Predicated region
    $region6: #{tpu_custom_call.1} parent=1 // pred_check
      _
    $region7: #{tpu_custom_call.1} parent=1 // pred_check_branch
      %27 = sbr.rel (0) target = $region9
    $region8: #{tpu_custom_call.1} parent=1 // pred_region
      _
    $region9: #{tpu_custom_call.1} parent=1 // pred_fallthru
      _
    // Predicated region
    $region10: #{tpu_custom_call.1} parent=1 // pred_check
      _
    $region11: #{tpu_custom_call.1} parent=1 // pred_check_branch
      %29 = sbr.rel (0) target = $region13
    $region12: #{tpu_custom_call.1} parent=1 // pred_region
      _
    $region13: #{tpu_custom_call.1} parent=1 // pred_fallthru
      _
    // Predicated region
    $region14: #{tpu_custom_call.1} parent=1 // pred_check
      _
    $region15: #{tpu_custom_call.1} parent=1 // pred_check_branch
      %31 = sbr.rel (0) target = $region17
    $region16: #{tpu_custom_call.1} parent=1 // pred_region
      _
    $region17: #{tpu_custom_call.1} parent=1 // pred_fallthru
      _
    // Predicated region
    $region18: #{tpu_custom_call.1} parent=1 // pred_check
      _
    $region19: #{tpu_custom_call.1} parent=1 // pred_check_branch
      %33 = sbr.rel (0) target = $region21
    $region20: #{tpu_custom_call.1} parent=1 // pred_region
      _
    $region21: #{tpu_custom_call.1} parent=1 // pred_fallthru
      _
    // Predicated region
    $region22: #{tpu_custom_call.1} parent=1 // pred_check
      _
    $region23: #{tpu_custom_call.1} parent=1 // pred_check_branch
      %35 = sbr.rel (0) target = $region25
    $region24: #{tpu_custom_call.1} parent=1 // pred_region
      _
    $region25: #{tpu_custom_call.1} parent=1 // pred_fallthru
      _
    // Predicated region
    $region26: #{tpu_custom_call.1} parent=1 // pred_check
      _
    $region27: #{tpu_custom_call.1} parent=1 // pred_check_branch
      %37 = sbr.rel (0) target = $region29
    $region28: #{tpu_custom_call.1} parent=1 // pred_region
      _
    $region29: #{tpu_custom_call.1} parent=1 // pred_fallthru
      _
    // Predicated region
    $region30: #{tpu_custom_call.1} parent=1 // pred_check
      _
    $region31: #{tpu_custom_call.1} parent=1 // pred_check_branch
      %39 = sbr.rel (0) target = $region33
    $region32: #{tpu_custom_call.1} parent=1 // pred_region
      _
    $region33: #{tpu_custom_call.1} parent=1 // pred_fallthru
      _
    // Predicated region
    $region34: #{tpu_custom_call.1} parent=1 // pred_check
      _
    $region35: #{tpu_custom_call.1} parent=1 // pred_check_branch
      %41 = sbr.rel (0) target = $region37
    $region36: #{tpu_custom_call.1} parent=1 // pred_region
      _
    $region37: #{tpu_custom_call.1} parent=1 // pred_fallthru
      _
    // Predicated region
    $region38: #{tpu_custom_call.1} parent=1 // pred_check
      _
    $region39: #{tpu_custom_call.1} parent=1 // pred_check_branch
      %43 = sbr.rel (0) target = $region41
    $region40: #{tpu_custom_call.1} parent=1 // pred_region
      _
    $region41: #{tpu_custom_call.1} parent=1 // pred_fallthru
      _
    // Predicated region
    $region42: #{tpu_custom_call.1} parent=1 // pred_check
      _
    $region43: #{tpu_custom_call.1} parent=1 // pred_check_branch
      %45 = sbr.rel (0) target = $region45
    $region44: #{tpu_custom_call.1} parent=1 // pred_region
      _
    $region45: #{tpu_custom_call.1} parent=1 // pred_fallthru
      _
    // Predicated region
    $region46: #{tpu_custom_call.1} parent=1 // pred_check
      _
    $region47: #{tpu_custom_call.1} parent=1 // pred_check_branch
      %47 = sbr.rel (0) target = $region49
    $region48: #{tpu_custom_call.1} parent=1 // pred_region
      _
    $region49: #{tpu_custom_call.1} parent=1 // pred_fallthru
      _
    // Predicated region
    $region50: #{tpu_custom_call.1} parent=1 // pred_check
      _
    $region51: #{tpu_custom_call.1} parent=1 // pred_check_branch
      %49 = sbr.rel (0) target = $region53
    $region52: #{tpu_custom_call.1} parent=1 // pred_region
      _
    $region53: #{tpu_custom_call.1} parent=1 // pred_fallthru
      _
    // Predicated region
    $region54: #{tpu_custom_call.1} parent=1 // pred_check
      _
    $region55: #{tpu_custom_call.1} parent=1 // pred_check_branch
      %51 = sbr.rel (0) target = $region57
    $region56: #{tpu_custom_call.1} parent=1 // pred_region
      _
    $region57: #{tpu_custom_call.1} parent=1 // pred_fallthru
      _
    // Predicated region
    $region58: #{tpu_custom_call.1} parent=1 // pred_check
      _
    $region59: #{tpu_custom_call.1} parent=1 // pred_check_branch
      %53 = sbr.rel (0) target = $region61
    $region60: #{tpu_custom_call.1} parent=1 // pred_region
      _
    $region61: #{tpu_custom_call.1} parent=1 // pred_fallthru
      _
    // Predicated region
    $region62: #{tpu_custom_call.1} parent=1 // pred_check
      _
    $region63: #{tpu_custom_call.1} parent=1 // pred_check_branch
      %55 = sbr.rel (0) target = $region65
    $region64: #{tpu_custom_call.1} parent=1 // pred_region
      _
    $region65: #{tpu_custom_call.1} parent=1 // pred_fallthru
      _
    // Predicated region
    $region66: #{tpu_custom_call.1} parent=1 // pred_check
      _
    $region67: #{tpu_custom_call.1} parent=1 // pred_check_branch
      %57 = sbr.rel (0) target = $region69
    $region68: #{tpu_custom_call.1} parent=1 // pred_region
      _
    $region69: #{tpu_custom_call.1} parent=1 // pred_fallthru
      _
    // Predicated region
    $region70: #{tpu_custom_call.1} parent=1 // pred_check
      _
    $region71: #{tpu_custom_call.1} parent=1 // pred_check_branch
      %59 = sbr.rel (0) target = $region73
    $region72: #{tpu_custom_call.1} parent=1 // pred_region
      _
    $region73: #{tpu_custom_call.1} parent=1 // pred_fallthru
      _
    %v61 = vld [vmem:[%s0] sm:$0xff]
    %v62 = vld [vmem:[%s0 + $0x8] sm:$0xff]
    %v63 = vld [vmem:[%s2] sm:$0xff]
    %v64 = vld [vmem:[%s2 + $0x8] sm:$0xff]
    %v65 = vld [vmem:[%s2 + $0x10] sm:$0xff]
    %v66 = vld [vmem:[%s2 + $0x18] sm:$0xff]
    %v67 = vld [vmem:[%s2 + $0x20] sm:$0xff]
    %v68 = vld [vmem:[%s2 + $0x28] sm:$0xff]
    %v69 = vld [vmem:[%s2 + $0x30] sm:$0xff]
    %v70 = vld [vmem:[%s2 + $0x38] sm:$0xff]
    %v71 = vld [vmem:[%s2 + $0x40] sm:$0xff]
    %v72 = vld [vmem:[%s2 + $0x48] sm:$0xff]
    %v73 = vld [vmem:[%s2 + $0x50] sm:$0xff]
    %v74 = vld [vmem:[%s2 + $0x58] sm:$0xff]
    %v75 = vld [vmem:[%s2 + $0x60] sm:$0xff]
    %v76 = vld [vmem:[%s2 + $0x68] sm:$0xff]
    %v77 = vld [vmem:[%s2 + $0x70] sm:$0xff]
    %v78 = vld [vmem:[%s2 + $0x78] sm:$0xff]
    %v79 = vld [vmem:[%s3] sm:$0xff]
    %v80 = vld [vmem:[%s3 + $0x8] sm:$0xff]
    %v81 = vld [vmem:[%s3 + $0x10] sm:$0xff]
    %v82 = vld [vmem:[%s3 + $0x18] sm:$0xff]
    %v83 = vld [vmem:[%s3 + $0x20] sm:$0xff]
    %v84 = vld [vmem:[%s3 + $0x28] sm:$0xff]
    %v85 = vld [vmem:[%s3 + $0x30] sm:$0xff]
    %v86 = vld [vmem:[%s3 + $0x38] sm:$0xff]
    %v87 = vld [vmem:[%s3 + $0x40] sm:$0xff]
    %v88 = vld [vmem:[%s3 + $0x48] sm:$0xff]
    %v89 = vld [vmem:[%s3 + $0x50] sm:$0xff]
    %v90 = vld [vmem:[%s3 + $0x58] sm:$0xff]
    %v91 = vld [vmem:[%s3 + $0x60] sm:$0xff]
    %v92 = vld [vmem:[%s3 + $0x68] sm:$0xff]
    %v93 = vld [vmem:[%s3 + $0x70] sm:$0xff]
    %v94 = vld [vmem:[%s3 + $0x78] sm:$0xff]
    %v95 = vld [vmem:[%s4] sm:$0xf]
    %v96 = vld [vmem:[%s4 + $0x4] sm:$0x7]
    %v97 = vld [vmem:[%s5] sm:$0xf]
    %v98 = vld [vmem:[%s5 + $0x4] sm:$0x7]
    %v99 = vld [vmem:[%s6] sm:$0x1]
    %v100 = vld [vmem:[%s7] sm:$0xf]
    %v101 = vld [vmem:[%s7 + $0x4] sm:$0xf]
    %v102 = vld [vmem:[%s8] sm:$0x1]
    %v103 = vld [vmem:[%s9] sm:$0xf]
    %v104 = vld [vmem:[%s9 + $0x4] sm:$0xf]
    %v105 = vld [vmem:[%s10] sm:$0x1]
    %v106 = vpack.c.bf16 %v62, %v61
    %v108 = vlaneseq
    %v109 = vshrl.u32 %v108, 7
    %v110 = vsub.s32 0, %v109
    %v111 = vrot.slane %v99, %v110
    %v115 = vunpack.c.l.b16 %v95
    %v116 = vunpack.c.l.b16 %v96
    %v117 = vpack.c.b16 %v116, %v115
    %vm118 = vcmask 113664
    %v120 = vsel %vm118, %v106, 0
    %vm122 = vcmask 1046528
    %v124 = vsel %vm122, %v117, 0
    %126 = vmatprep.subr.bf16.mxu0 0
    %127 = vmatpush1.bf16.msra.mxu0 %v124
    %128 = vmatprep.subr.bf16.mxu0 0
    %129 = vmatpush1.bf16.msra.mxu0 0
    %130 = vmatprep.subr.bf16.mxu0 0
    %131 = vmatpush1.bf16.msra.mxu0 0
    %132 = vmatprep.subr.bf16.mxu0 0
    %133 = vmatpush1.bf16.msra.mxu0 0
    %134 = vmatprep.subr.bf16.mxu0 0
    %135 = vmatpush1.bf16.msra.mxu0 0
    %136 = vmatprep.subr.bf16.mxu0 0
    %137 = vmatpush1.bf16.msra.mxu0 0
    %138 = vmatprep.subr.bf16.mxu0 0
    %139 = vmatpush1.bf16.msra.mxu0 0
    %140 = vmatprep.subr.bf16.mxu0 0
    %141 = vmatpush1.bf16.msra.mxu0 0
    %142 = vmatprep.subr.bf16.mxu0 0
    %143 = vmatpush1.bf16.msra.mxu0 0
    %144 = vmatprep.subr.bf16.mxu0 0
    %145 = vmatpush1.bf16.msra.mxu0 0
    %146 = vmatprep.subr.bf16.mxu0 0
    %147 = vmatpush1.bf16.msra.mxu0 0
    %148 = vmatprep.subr.bf16.mxu0 0
    %149 = vmatpush1.bf16.msra.mxu0 0
    %150 = vmatprep.subr.bf16.mxu0 0
    %151 = vmatpush1.bf16.msra.mxu0 0
    %152 = vmatprep.subr.bf16.mxu0 0
    %153 = vmatpush1.bf16.msra.mxu0 0
    %154 = vmatprep.subr.bf16.mxu0 0
    %155 = vmatpush1.bf16.msra.mxu0 0
    %156 = vmatprep.subr.bf16.mxu0 0
    %157 = vmatpush1.bf16.msra.mxu0 0
    %158 = vmatprep.mubr.bf16.mxu0 0
    %159 = vmatmul.mubr.bf16.gmra.mrb[0].mxu0 %v120
    %v160 = vpop.f32.mrb[0].mxu0
    %v161 = vadd.f32 %v111, %v160
    %v162 = vpop.f32.mrb[0].mxu0
    %v163 = vpop.f32.mrb[0].mxu0
    %v164 = vadd.f32 %v111, %v163
    %v165 = vpop.f32.mrb[0].mxu0
    %166 = vdwg.mxu0
    %v167 = vpack.c.bf16 %v64, %v63
    %v168 = vpack.c.bf16 %v66, %v65
    %v169 = vpack.c.bf16 %v68, %v67
    %v170 = vpack.c.bf16 %v70, %v69
    %v171 = vpack.c.bf16 %v72, %v71
    %v172 = vpack.c.bf16 %v74, %v73
    %v173 = vpack.c.bf16 %v76, %v75
    %v174 = vpack.c.bf16 %v78, %v77
    %v177 = vunpack.c.l.b16 %v97
    %v178 = vunpack.c.l.b16 %v98
    %v179 = vpack.c.b16 %v178, %v177
    %v181 = vsel %vm118, %v167, 0
    %v184 = vsel %vm118, %v168, 0
    %v187 = vsel %vm118, %v169, 0
    %v190 = vsel %vm118, %v170, 0
    %v193 = vsel %vm118, %v171, 0
    %v196 = vsel %vm118, %v172, 0
    %v199 = vsel %vm118, %v173, 0
    %v202 = vsel %vm118, %v174, 0
    %v205 = vsel %vm122, %v179, 0
    %207 = vmatprep.subr.bf16.mxu0 0
    %208 = vmatpush1.bf16.msra.mxu0 %v205
    %209 = vmatprep.subr.bf16.mxu0 0
    %210 = vmatpush1.bf16.msra.mxu0 0
    %211 = vmatprep.subr.bf16.mxu0 0
    %212 = vmatpush1.bf16.msra.mxu0 0
    %213 = vmatprep.subr.bf16.mxu0 0
    %214 = vmatpush1.bf16.msra.mxu0 0
    %215 = vmatprep.subr.bf16.mxu0 0
    %216 = vmatpush1.bf16.msra.mxu0 0
    %217 = vmatprep.subr.bf16.mxu0 0
    %218 = vmatpush1.bf16.msra.mxu0 0
    %219 = vmatprep.subr.bf16.mxu0 0
    %220 = vmatpush1.bf16.msra.mxu0 0
    %221 = vmatprep.subr.bf16.mxu0 0
    %222 = vmatpush1.bf16.msra.mxu0 0
    %223 = vmatprep.subr.bf16.mxu0 0
    %224 = vmatpush1.bf16.msra.mxu0 0
    %225 = vmatprep.subr.bf16.mxu0 0
    %226 = vmatpush1.bf16.msra.mxu0 0
    %227 = vmatprep.subr.bf16.mxu0 0
    %228 = vmatpush1.bf16.msra.mxu0 0
    %229 = vmatprep.subr.bf16.mxu0 0
    %230 = vmatpush1.bf16.msra.mxu0 0
    %231 = vmatprep.subr.bf16.mxu0 0
    %232 = vmatpush1.bf16.msra.mxu0 0
    %233 = vmatprep.subr.bf16.mxu0 0
    %234 = vmatpush1.bf16.msra.mxu0 0
    %235 = vmatprep.subr.bf16.mxu0 0
    %236 = vmatpush1.bf16.msra.mxu0 0
    %237 = vmatprep.subr.bf16.mxu0 0
    %238 = vmatpush1.bf16.msra.mxu0 0
    %239 = vmatprep.mubr.bf16.mxu0 0
    %240 = vmatmul.mubr.bf16.gmra.mrb[0].mxu0 %v181
    %v241 = vpop.f32.mrb[0].mxu0
    %v242 = vadd.f32 0.0, %v241
    %v243 = vpop.f32.mrb[0].mxu0
    %v244 = vpop.f32.mrb[0].mxu0
    %v245 = vadd.f32 0.0, %v244
    %v246 = vpop.f32.mrb[0].mxu0
    %247 = vmatprep.mubr.bf16.mxu0 0
    %248 = vmatmul.mubr.bf16.gmra.mrb[0].mxu0 %v184
    %v249 = vpop.f32.mrb[0].mxu0
    %v250 = vadd.f32 0.0, %v249
    %v251 = vpop.f32.mrb[0].mxu0
    %v252 = vpop.f32.mrb[0].mxu0
    %v253 = vadd.f32 0.0, %v252
    %v254 = vpop.f32.mrb[0].mxu0
    %255 = vmatprep.mubr.bf16.mxu0 0
    %256 = vmatmul.mubr.bf16.gmra.mrb[0].mxu0 %v187
    %v257 = vpop.f32.mrb[0].mxu0
    %v258 = vadd.f32 0.0, %v257
    %v259 = vpop.f32.mrb[0].mxu0
    %v260 = vpop.f32.mrb[0].mxu0
    %v261 = vadd.f32 0.0, %v260
    %v262 = vpop.f32.mrb[0].mxu0
    %263 = vmatprep.mubr.bf16.mxu0 0
    %264 = vmatmul.mubr.bf16.gmra.mrb[0].mxu0 %v190
    %v265 = vpop.f32.mrb[0].mxu0
    %v266 = vadd.f32 0.0, %v265
    %v267 = vpop.f32.mrb[0].mxu0
    %v268 = vpop.f32.mrb[0].mxu0
    %v269 = vadd.f32 0.0, %v268
    %v270 = vpop.f32.mrb[0].mxu0
    %271 = vmatprep.mubr.bf16.mxu0 0
    %272 = vmatmul.mubr.bf16.gmra.mrb[0].mxu0 %v193
    %v273 = vpop.f32.mrb[0].mxu0
    %v274 = vadd.f32 0.0, %v273
    %v275 = vpop.f32.mrb[0].mxu0
    %v276 = vpop.f32.mrb[0].mxu0
    %v277 = vadd.f32 0.0, %v276
    %v278 = vpop.f32.mrb[0].mxu0
    %279 = vmatprep.mubr.bf16.mxu0 0
    %280 = vmatmul.mubr.bf16.gmra.mrb[0].mxu0 %v196
    %v281 = vpop.f32.mrb[0].mxu0
    %v282 = vadd.f32 0.0, %v281
    %v283 = vpop.f32.mrb[0].mxu0
    %v284 = vpop.f32.mrb[0].mxu0
    %v285 = vadd.f32 0.0, %v284
    %v286 = vpop.f32.mrb[0].mxu0
    %287 = vmatprep.mubr.bf16.mxu0 0
    %288 = vmatmul.mubr.bf16.gmra.mrb[0].mxu0 %v199
    %v289 = vpop.f32.mrb[0].mxu0
    %v290 = vadd.f32 0.0, %v289
    %v291 = vpop.f32.mrb[0].mxu0
    %v292 = vpop.f32.mrb[0].mxu0
    %v293 = vadd.f32 0.0, %v292
    %v294 = vpop.f32.mrb[0].mxu0
    %295 = vmatprep.mubr.bf16.mxu0 0
    %296 = vmatmul.mubr.bf16.gmra.mrb[0].mxu0 %v202
    %v297 = vpop.f32.mrb[0].mxu0
    %v298 = vadd.f32 0.0, %v297
    %v299 = vpop.f32.mrb[0].mxu0
    %v300 = vpop.f32.mrb[0].mxu0
    %v301 = vadd.f32 0.0, %v300
    %v302 = vpop.f32.mrb[0].mxu0
    %303 = vdwg.mxu0
    %v306 = vcombine.high %v161, %v161
    %v308 = vunpack.c.l.s4 1966171168
    %v309 = vunpack.c.0.s8 %v308
    %v310 = vlaneseq
    %v311 = vshrl.u32 %v310, 7
    %v312 = vsub.s32 %v309, %v311
    %v313 = vrot.slane %v161, %v312
    %v315 = vunpack.c.l.s4 1966171168
    %v316 = vunpack.c.0.s8 %v315
    %v317 = vlaneseq
    %v318 = vshrl.u32 %v317, 7
    %v319 = vsub.s32 %v316, %v318
    %v320 = vrot.slane %v306, %v319
    %v321 = vcombine.high %v313, %v313
    %v322 = vcombine.high %v320, %v320
    %v324 = vunpack.c.l.s4 1966171168
    %v325 = vunpack.c.0.s8 %v324
    %v326 = vlaneseq
    %v327 = vshrl.u32 %v326, 7
    %v328 = vsub.s32 %v325, %v327
    %v329 = vrot.slane %v313, %v328
    %v331 = vunpack.c.l.s4 1966171168
    %v332 = vunpack.c.0.s8 %v331
    %v333 = vlaneseq
    %v334 = vshrl.u32 %v333, 7
    %v335 = vsub.s32 %v332, %v334
    %v336 = vrot.slane %v320, %v335
    %v338 = vunpack.c.l.s4 1966171168
    %v339 = vunpack.c.0.s8 %v338
    %v340 = vlaneseq
    %v341 = vshrl.u32 %v340, 7
    %v342 = vsub.s32 %v339, %v341
    %v343 = vrot.slane %v321, %v342
    %v345 = vunpack.c.l.s4 1966171168
    %v346 = vunpack.c.0.s8 %v345
    %v347 = vlaneseq
    %v348 = vshrl.u32 %v347, 7
    %v349 = vsub.s32 %v346, %v348
    %v350 = vrot.slane %v322, %v349
    %v351 = vcombine.high %v329, %v329
    %v352 = vcombine.high %v336, %v336
    %v353 = vcombine.high %v343, %v343
    %v354 = vcombine.high %v350, %v350
    %v355 = vcombine.high %v164, %v164
    %v357 = vunpack.c.l.s4 1966171168
    %v358 = vunpack.c.0.s8 %v357
    %v359 = vlaneseq
    %v360 = vshrl.u32 %v359, 7
    %v361 = vsub.s32 %v358, %v360
    %v362 = vrot.slane %v164, %v361
    %v364 = vunpack.c.l.s4 1966171168
    %v365 = vunpack.c.0.s8 %v364
    %v366 = vlaneseq
    %v367 = vshrl.u32 %v366, 7
    %v368 = vsub.s32 %v365, %v367
    %v369 = vrot.slane %v355, %v368
    %v370 = vcombine.high %v362, %v362
    %v371 = vcombine.high %v369, %v369
    %v373 = vunpack.c.l.s4 1966171168
    %v374 = vunpack.c.0.s8 %v373
    %v375 = vlaneseq
    %v376 = vshrl.u32 %v375, 7
    %v377 = vsub.s32 %v374, %v376
    %v378 = vrot.slane %v362, %v377
    %v380 = vunpack.c.l.s4 1966171168
    %v381 = vunpack.c.0.s8 %v380
    %v382 = vlaneseq
    %v383 = vshrl.u32 %v382, 7
    %v384 = vsub.s32 %v381, %v383
    %v385 = vrot.slane %v369, %v384
    %v387 = vunpack.c.l.s4 1966171168
    %v388 = vunpack.c.0.s8 %v387
    %v389 = vlaneseq
    %v390 = vshrl.u32 %v389, 7
    %v391 = vsub.s32 %v388, %v390
    %v392 = vrot.slane %v370, %v391
    %v394 = vunpack.c.l.s4 1966171168
    %v395 = vunpack.c.0.s8 %v394
    %v396 = vlaneseq
    %v397 = vshrl.u32 %v396, 7
    %v398 = vsub.s32 %v395, %v397
    %v399 = vrot.slane %v371, %v398
    %v400 = vcombine.high %v378, %v378
    %v401 = vcombine.high %v385, %v385
    %v402 = vcombine.high %v392, %v392
    %v403 = vcombine.high %v399, %v399
    %v404 = vlaneseq
    %v405 = vshrl.u32 %v404, 7
    %v406 = vsub.s32 0, %v405
    %v407 = vrot.slane %v329, %v406
    %v408 = vlaneseq
    %v409 = vshrl.u32 %v408, 7
    %v410 = vsub.s32 0, %v409
    %v411 = vrot.slane %v343, %v410
    %v412 = vlaneseq
    %v413 = vshrl.u32 %v412, 7
    %v414 = vsub.s32 0, %v413
    %v415 = vrot.slane %v351, %v414
    %v416 = vlaneseq
    %v417 = vshrl.u32 %v416, 7
    %v418 = vsub.s32 0, %v417
    %v419 = vrot.slane %v353, %v418
    %v420 = vlaneseq
    %v421 = vshrl.u32 %v420, 7
    %v422 = vsub.s32 0, %v421
    %v423 = vrot.slane %v336, %v422
    %v424 = vlaneseq
    %v425 = vshrl.u32 %v424, 7
    %v426 = vsub.s32 0, %v425
    %v427 = vrot.slane %v350, %v426
    %v428 = vlaneseq
    %v429 = vshrl.u32 %v428, 7
    %v430 = vsub.s32 0, %v429
    %v431 = vrot.slane %v352, %v430
    %v432 = vlaneseq
    %v433 = vshrl.u32 %v432, 7
    %v434 = vsub.s32 0, %v433
    %v435 = vrot.slane %v354, %v434
    %v436 = vlaneseq
    %v437 = vshrl.u32 %v436, 7
    %v438 = vsub.s32 0, %v437
    %v439 = vrot.slane %v378, %v438
    %v440 = vlaneseq
    %v441 = vshrl.u32 %v440, 7
    %v442 = vsub.s32 0, %v441
    %v443 = vrot.slane %v392, %v442
    %v444 = vlaneseq
    %v445 = vshrl.u32 %v444, 7
    %v446 = vsub.s32 0, %v445
    %v447 = vrot.slane %v400, %v446
    %v448 = vlaneseq
    %v449 = vshrl.u32 %v448, 7
    %v450 = vsub.s32 0, %v449
    %v451 = vrot.slane %v402, %v450
    %v452 = vlaneseq
    %v453 = vshrl.u32 %v452, 7
    %v454 = vsub.s32 0, %v453
    %v455 = vrot.slane %v385, %v454
    %v456 = vlaneseq
    %v457 = vshrl.u32 %v456, 7
    %v458 = vsub.s32 0, %v457
    %v459 = vrot.slane %v399, %v458
    %v460 = vlaneseq
    %v461 = vshrl.u32 %v460, 7
    %v462 = vsub.s32 0, %v461
    %v463 = vrot.slane %v401, %v462
    %v464 = vlaneseq
    %v465 = vshrl.u32 %v464, 7
    %v466 = vsub.s32 0, %v465
    %v467 = vrot.slane %v403, %v466
    %v484 = vadd.f32 %v242, %v407
    %v485 = vadd.f32 %v245, %v411
    %v486 = vadd.f32 %v250, %v415
    %v487 = vadd.f32 %v253, %v419
    %v488 = vadd.f32 %v258, %v423
    %v489 = vadd.f32 %v261, %v427
    %v490 = vadd.f32 %v266, %v431
    %v491 = vadd.f32 %v269, %v435
    %v492 = vadd.f32 %v274, %v439
    %v493 = vadd.f32 %v277, %v443
    %v494 = vadd.f32 %v282, %v447
    %v495 = vadd.f32 %v285, %v451
    %v496 = vadd.f32 %v290, %v455
    %v497 = vadd.f32 %v293, %v459
    %v498 = vadd.f32 %v298, %v463
    %v499 = vadd.f32 %v301, %v467
    %v500 = vmax.f32 %v484, 0.0
    %v501 = vmax.f32 %v485, 0.0
    %v502 = vmax.f32 %v486, 0.0
    %v503 = vmax.f32 %v487, 0.0
    %v504 = vmax.f32 %v488, 0.0
    %v505 = vmax.f32 %v489, 0.0
    %v506 = vmax.f32 %v490, 0.0
    %v507 = vmax.f32 %v491, 0.0
    %v508 = vmax.f32 %v492, 0.0
    %v509 = vmax.f32 %v493, 0.0
    %v510 = vmax.f32 %v494, 0.0
    %v511 = vmax.f32 %v495, 0.0
    %v512 = vmax.f32 %v496, 0.0
    %v513 = vmax.f32 %v497, 0.0
    %v514 = vmax.f32 %v498, 0.0
    %v515 = vmax.f32 %v499, 0.0
    %v516 = vpack.c.bf16 %v501, %v500
    %v517 = vpack.c.bf16 %v503, %v502
    %v518 = vpack.c.bf16 %v505, %v504
    %v519 = vpack.c.bf16 %v507, %v506
    %v520 = vpack.c.bf16 %v509, %v508
    %v521 = vpack.c.bf16 %v511, %v510
    %v522 = vpack.c.bf16 %v513, %v512
    %v523 = vpack.c.bf16 %v515, %v514
    %v525 = vlaneseq
    %v526 = vshrl.u32 %v525, 7
    %v527 = vsub.s32 0, %v526
    %v528 = vrot.slane %v102, %v527
    %v532 = vunpack.c.l.b16 %v100
    %v533 = vunpack.c.l.b16 %v101
    %v534 = vpack.c.b16 %v533, %v532
    %vm536 = vcmask 130048
    %v538 = vsel %vm536, %v516, 0
    %v541 = vsel %vm536, %v517, 0
    %v544 = vsel %vm536, %v518, 0
    %v547 = vsel %vm536, %v519, 0
    %v550 = vsel %vm536, %v520, 0
    %v553 = vsel %vm536, %v521, 0
    %v556 = vsel %vm536, %v522, 0
    %v559 = vsel %vm536, %v523, 0
    %561 = vmatprep.subr.bf16.mxu0 0
    %562 = vmatpush1.bf16.msra.mxu0 %v534
    %563 = vmatprep.subr.bf16.mxu0 0
    %564 = vmatpush1.bf16.msra.mxu0 0
    %565 = vmatprep.subr.bf16.mxu0 0
    %566 = vmatpush1.bf16.msra.mxu0 0
    %567 = vmatprep.subr.bf16.mxu0 0
    %568 = vmatpush1.bf16.msra.mxu0 0
    %569 = vmatprep.subr.bf16.mxu0 0
    %570 = vmatpush1.bf16.msra.mxu0 0
    %571 = vmatprep.subr.bf16.mxu0 0
    %572 = vmatpush1.bf16.msra.mxu0 0
    %573 = vmatprep.subr.bf16.mxu0 0
    %574 = vmatpush1.bf16.msra.mxu0 0
    %575 = vmatprep.subr.bf16.mxu0 0
    %576 = vmatpush1.bf16.msra.mxu0 0
    %577 = vmatprep.subr.bf16.mxu0 0
    %578 = vmatpush1.bf16.msra.mxu0 0
    %579 = vmatprep.subr.bf16.mxu0 0
    %580 = vmatpush1.bf16.msra.mxu0 0
    %581 = vmatprep.subr.bf16.mxu0 0
    %582 = vmatpush1.bf16.msra.mxu0 0
    %583 = vmatprep.subr.bf16.mxu0 0
    %584 = vmatpush1.bf16.msra.mxu0 0
    %585 = vmatprep.subr.bf16.mxu0 0
    %586 = vmatpush1.bf16.msra.mxu0 0
    %587 = vmatprep.subr.bf16.mxu0 0
    %588 = vmatpush1.bf16.msra.mxu0 0
    %589 = vmatprep.subr.bf16.mxu0 0
    %590 = vmatpush1.bf16.msra.mxu0 0
    %591 = vmatprep.subr.bf16.mxu0 0
    %592 = vmatpush1.bf16.msra.mxu0 0
    %593 = vmatprep.mubr.bf16.mxu0 0
    %594 = vmatmul.mubr.bf16.gmra.mrb[0].mxu0 %v538
    %v595 = vpop.f32.mrb[0].mxu0
    %v596 = vadd.f32 %v528, %v595
    %v597 = vpop.f32.mrb[0].mxu0
    %v598 = vpop.f32.mrb[0].mxu0
    %v599 = vadd.f32 %v528, %v598
    %v600 = vpop.f32.mrb[0].mxu0
    %601 = vmatprep.mubr.bf16.mxu0 0
    %602 = vmatmul.mubr.bf16.gmra.mrb[0].mxu0 %v541
    %v603 = vpop.f32.mrb[0].mxu0
    %v604 = vadd.f32 %v528, %v603
    %v605 = vpop.f32.mrb[0].mxu0
    %v606 = vpop.f32.mrb[0].mxu0
    %v607 = vadd.f32 %v528, %v606
    %v608 = vpop.f32.mrb[0].mxu0
    %609 = vmatprep.mubr.bf16.mxu0 0
    %610 = vmatmul.mubr.bf16.gmra.mrb[0].mxu0 %v544
    %v611 = vpop.f32.mrb[0].mxu0
    %v612 = vadd.f32 %v528, %v611
    %v613 = vpop.f32.mrb[0].mxu0
    %v614 = vpop.f32.mrb[0].mxu0
    %v615 = vadd.f32 %v528, %v614
    %v616 = vpop.f32.mrb[0].mxu0
    %617 = vmatprep.mubr.bf16.mxu0 0
    %618 = vmatmul.mubr.bf16.gmra.mrb[0].mxu0 %v547
    %v619 = vpop.f32.mrb[0].mxu0
    %v620 = vadd.f32 %v528, %v619
    %v621 = vpop.f32.mrb[0].mxu0
    %v622 = vpop.f32.mrb[0].mxu0
    %v623 = vadd.f32 %v528, %v622
    %v624 = vpop.f32.mrb[0].mxu0
    %625 = vmatprep.mubr.bf16.mxu0 0
    %626 = vmatmul.mubr.bf16.gmra.mrb[0].mxu0 %v550
    %v627 = vpop.f32.mrb[0].mxu0
    %v628 = vadd.f32 %v528, %v627
    %v629 = vpop.f32.mrb[0].mxu0
    %v630 = vpop.f32.mrb[0].mxu0
    %v631 = vadd.f32 %v528, %v630
    %v632 = vpop.f32.mrb[0].mxu0
    %633 = vmatprep.mubr.bf16.mxu0 0
    %634 = vmatmul.mubr.bf16.gmra.mrb[0].mxu0 %v553
    %v635 = vpop.f32.mrb[0].mxu0
    %v636 = vadd.f32 %v528, %v635
    %v637 = vpop.f32.mrb[0].mxu0
    %v638 = vpop.f32.mrb[0].mxu0
    %v639 = vadd.f32 %v528, %v638
    %v640 = vpop.f32.mrb[0].mxu0
    %641 = vmatprep.mubr.bf16.mxu0 0
    %642 = vmatmul.mubr.bf16.gmra.mrb[0].mxu0 %v556
    %v643 = vpop.f32.mrb[0].mxu0
    %v644 = vadd.f32 %v528, %v643
    %v645 = vpop.f32.mrb[0].mxu0
    %v646 = vpop.f32.mrb[0].mxu0
    %v647 = vadd.f32 %v528, %v646
    %v648 = vpop.f32.mrb[0].mxu0
    %649 = vmatprep.mubr.bf16.mxu0 0
    %650 = vmatmul.mubr.bf16.gmra.mrb[0].mxu0 %v559
    %v651 = vpop.f32.mrb[0].mxu0
    %v652 = vadd.f32 %v528, %v651
    %v653 = vpop.f32.mrb[0].mxu0
    %v654 = vpop.f32.mrb[0].mxu0
    %v655 = vadd.f32 %v528, %v654
    %v656 = vpop.f32.mrb[0].mxu0
    %657 = vdwg.mxu0
    %v658 = vmax.f32 %v596, 0.0
    %v659 = vmax.f32 %v599, 0.0
    %v660 = vmax.f32 %v604, 0.0
    %v661 = vmax.f32 %v607, 0.0
    %v662 = vmax.f32 %v612, 0.0
    %v663 = vmax.f32 %v615, 0.0
    %v664 = vmax.f32 %v620, 0.0
    %v665 = vmax.f32 %v623, 0.0
    %v666 = vmax.f32 %v628, 0.0
    %v667 = vmax.f32 %v631, 0.0
    %v668 = vmax.f32 %v636, 0.0
    %v669 = vmax.f32 %v639, 0.0
    %v670 = vmax.f32 %v644, 0.0
    %v671 = vmax.f32 %v647, 0.0
    %v672 = vmax.f32 %v652, 0.0
    %v673 = vmax.f32 %v655, 0.0
    %675 = vset.pattern.permute.xlu0 0
    %676 = vperm.xlu0 %675, %v79
    %v677 = vpop.permute.xlu0 %676
    %680 = vset.pattern.permute.xlu0 0
    %681 = vperm.xlu0 %680, %v80
    %v682 = vpop.permute.xlu0 %681
    %685 = vset.pattern.permute.xlu0 0
    %686 = vperm.xlu0 %685, %v81
    %v687 = vpop.permute.xlu0 %686
    %690 = vset.pattern.permute.xlu0 0
    %691 = vperm.xlu0 %690, %v82
    %v692 = vpop.permute.xlu0 %691
    %695 = vset.pattern.permute.xlu0 0
    %696 = vperm.xlu0 %695, %v83
    %v697 = vpop.permute.xlu0 %696
    %700 = vset.pattern.permute.xlu0 0
    %701 = vperm.xlu0 %700, %v84
    %v702 = vpop.permute.xlu0 %701
    %705 = vset.pattern.permute.xlu0 0
    %706 = vperm.xlu0 %705, %v85
    %v707 = vpop.permute.xlu0 %706
    %710 = vset.pattern.permute.xlu0 0
    %711 = vperm.xlu0 %710, %v86
    %v712 = vpop.permute.xlu0 %711
    %715 = vset.pattern.permute.xlu0 0
    %716 = vperm.xlu0 %715, %v87
    %v717 = vpop.permute.xlu0 %716
    %720 = vset.pattern.permute.xlu0 0
    %721 = vperm.xlu0 %720, %v88
    %v722 = vpop.permute.xlu0 %721
    %725 = vset.pattern.permute.xlu0 0
    %726 = vperm.xlu0 %725, %v89
    %v727 = vpop.permute.xlu0 %726
    %730 = vset.pattern.permute.xlu0 0
    %731 = vperm.xlu0 %730, %v90
    %v732 = vpop.permute.xlu0 %731
    %735 = vset.pattern.permute.xlu0 0
    %736 = vperm.xlu0 %735, %v91
    %v737 = vpop.permute.xlu0 %736
    %740 = vset.pattern.permute.xlu0 0
    %741 = vperm.xlu0 %740, %v92
    %v742 = vpop.permute.xlu0 %741
    %745 = vset.pattern.permute.xlu0 0
    %746 = vperm.xlu0 %745, %v93
    %v747 = vpop.permute.xlu0 %746
    %750 = vset.pattern.permute.xlu0 0
    %751 = vperm.xlu0 %750, %v94
    %v752 = vpop.permute.xlu0 %751
    %v754 = vmul.f32 %v658, %v677
    %v755 = vmul.f32 %v659, %v682
    %v756 = vmul.f32 %v660, %v687
    %v757 = vmul.f32 %v661, %v692
    %v758 = vmul.f32 %v662, %v697
    %v759 = vmul.f32 %v663, %v702
    %v760 = vmul.f32 %v664, %v707
    %v761 = vmul.f32 %v665, %v712
    %v762 = vmul.f32 %v666, %v717
    %v763 = vmul.f32 %v667, %v722
    %v764 = vmul.f32 %v668, %v727
    %v765 = vmul.f32 %v669, %v732
    %v766 = vmul.f32 %v670, %v737
    %v767 = vmul.f32 %v671, %v742
    %v768 = vmul.f32 %v672, %v747
    %v769 = vmul.f32 %v673, %v752
    %v770 = vsel %vm536, %v754, 0.0
    %v771 = vrot.slane %v770, 4
    %v772 = vadd.f32 %v770, %v771
    %v773 = vrot.slane %v772, 2
    %v774 = vadd.f32 %v772, %v773
    %v775 = vrot.slane %v774, 1
    %v776 = vadd.f32 %v774, %v775
    %v777 = vsel %vm536, %v755, 0.0
    %v778 = vrot.slane %v777, 4
    %v779 = vadd.f32 %v777, %v778
    %v780 = vrot.slane %v779, 2
    %v781 = vadd.f32 %v779, %v780
    %v782 = vrot.slane %v781, 1
    %v783 = vadd.f32 %v781, %v782
    %v784 = vsel %vm536, %v756, 0.0
    %v785 = vrot.slane %v784, 4
    %v786 = vadd.f32 %v784, %v785
    %v787 = vrot.slane %v786, 2
    %v788 = vadd.f32 %v786, %v787
    %v789 = vrot.slane %v788, 1
    %v790 = vadd.f32 %v788, %v789
    %v791 = vsel %vm536, %v757, 0.0
    %v792 = vrot.slane %v791, 4
    %v793 = vadd.f32 %v791, %v792
    %v794 = vrot.slane %v793, 2
    %v795 = vadd.f32 %v793, %v794
    %v796 = vrot.slane %v795, 1
    %v797 = vadd.f32 %v795, %v796
    %v798 = vsel %vm536, %v758, 0.0
    %v799 = vrot.slane %v798, 4
    %v800 = vadd.f32 %v798, %v799
    %v801 = vrot.slane %v800, 2
    %v802 = vadd.f32 %v800, %v801
    %v803 = vrot.slane %v802, 1
    %v804 = vadd.f32 %v802, %v803
    %v805 = vsel %vm536, %v759, 0.0
    %v806 = vrot.slane %v805, 4
    %v807 = vadd.f32 %v805, %v806
    %v808 = vrot.slane %v807, 2
    %v809 = vadd.f32 %v807, %v808
    %v810 = vrot.slane %v809, 1
    %v811 = vadd.f32 %v809, %v810
    %v812 = vsel %vm536, %v760, 0.0
    %v813 = vrot.slane %v812, 4
    %v814 = vadd.f32 %v812, %v813
    %v815 = vrot.slane %v814, 2
    %v816 = vadd.f32 %v814, %v815
    %v817 = vrot.slane %v816, 1
    %v818 = vadd.f32 %v816, %v817
    %v819 = vsel %vm536, %v761, 0.0
    %v820 = vrot.slane %v819, 4
    %v821 = vadd.f32 %v819, %v820
    %v822 = vrot.slane %v821, 2
    %v823 = vadd.f32 %v821, %v822
    %v824 = vrot.slane %v823, 1
    %v825 = vadd.f32 %v823, %v824
    %v826 = vsel %vm536, %v762, 0.0
    %v827 = vrot.slane %v826, 4
    %v828 = vadd.f32 %v826, %v827
    %v829 = vrot.slane %v828, 2
    %v830 = vadd.f32 %v828, %v829
    %v831 = vrot.slane %v830, 1
    %v832 = vadd.f32 %v830, %v831
    %v833 = vsel %vm536, %v763, 0.0
    %v834 = vrot.slane %v833, 4
    %v835 = vadd.f32 %v833, %v834
    %v836 = vrot.slane %v835, 2
    %v837 = vadd.f32 %v835, %v836
    %v838 = vrot.slane %v837, 1
    %v839 = vadd.f32 %v837, %v838
    %v840 = vsel %vm536, %v764, 0.0
    %v841 = vrot.slane %v840, 4
    %v842 = vadd.f32 %v840, %v841
    %v843 = vrot.slane %v842, 2
    %v844 = vadd.f32 %v842, %v843
    %v845 = vrot.slane %v844, 1
    %v846 = vadd.f32 %v844, %v845
    %v847 = vsel %vm536, %v765, 0.0
    %v848 = vrot.slane %v847, 4
    %v849 = vadd.f32 %v847, %v848
    %v850 = vrot.slane %v849, 2
    %v851 = vadd.f32 %v849, %v850
    %v852 = vrot.slane %v851, 1
    %v853 = vadd.f32 %v851, %v852
    %v854 = vsel %vm536, %v766, 0.0
    %v855 = vrot.slane %v854, 4
    %v856 = vadd.f32 %v854, %v855
    %v857 = vrot.slane %v856, 2
    %v858 = vadd.f32 %v856, %v857
    %v859 = vrot.slane %v858, 1
    %v860 = vadd.f32 %v858, %v859
    %v861 = vsel %vm536, %v767, 0.0
    %v862 = vrot.slane %v861, 4
    %v863 = vadd.f32 %v861, %v862
    %v864 = vrot.slane %v863, 2
    %v865 = vadd.f32 %v863, %v864
    %v866 = vrot.slane %v865, 1
    %v867 = vadd.f32 %v865, %v866
    %v868 = vsel %vm536, %v768, 0.0
    %v869 = vrot.slane %v868, 4
    %v870 = vadd.f32 %v868, %v869
    %v871 = vrot.slane %v870, 2
    %v872 = vadd.f32 %v870, %v871
    %v873 = vrot.slane %v872, 1
    %v874 = vadd.f32 %v872, %v873
    %v875 = vsel %vm536, %v769, 0.0
    %v876 = vrot.slane %v875, 4
    %v877 = vadd.f32 %v875, %v876
    %v878 = vrot.slane %v877, 2
    %v879 = vadd.f32 %v877, %v878
    %v880 = vrot.slane %v879, 1
    %v881 = vadd.f32 %v879, %v880
    %vm882 = vcmask 7168
    %v883 = vsel %vm882, %v79, 0.0
    %v884 = vrot.slane %v883, 4
    %v885 = vadd.f32 %v883, %v884
    %v886 = vrot.slane %v885, 2
    %v887 = vadd.f32 %v885, %v886
    %v888 = vrot.slane %v887, 1
    %v889 = vadd.f32 %v887, %v888
    %v890 = vsel %vm882, %v80, 0.0
    %v891 = vrot.slane %v890, 4
    %v892 = vadd.f32 %v890, %v891
    %v893 = vrot.slane %v892, 2
    %v894 = vadd.f32 %v892, %v893
    %v895 = vrot.slane %v894, 1
    %v896 = vadd.f32 %v894, %v895
    %v897 = vsel %vm882, %v81, 0.0
    %v898 = vrot.slane %v897, 4
    %v899 = vadd.f32 %v897, %v898
    %v900 = vrot.slane %v899, 2
    %v901 = vadd.f32 %v899, %v900
    %v902 = vrot.slane %v901, 1
    %v903 = vadd.f32 %v901, %v902
    %v904 = vsel %vm882, %v82, 0.0
    %v905 = vrot.slane %v904, 4
    %v906 = vadd.f32 %v904, %v905
    %v907 = vrot.slane %v906, 2
    %v908 = vadd.f32 %v906, %v907
    %v909 = vrot.slane %v908, 1
    %v910 = vadd.f32 %v908, %v909
    %v911 = vsel %vm882, %v83, 0.0
    %v912 = vrot.slane %v911, 4
    %v913 = vadd.f32 %v911, %v912
    %v914 = vrot.slane %v913, 2
    %v915 = vadd.f32 %v913, %v914
    %v916 = vrot.slane %v915, 1
    %v917 = vadd.f32 %v915, %v916
    %v918 = vsel %vm882, %v84, 0.0
    %v919 = vrot.slane %v918, 4
    %v920 = vadd.f32 %v918, %v919
    %v921 = vrot.slane %v920, 2
    %v922 = vadd.f32 %v920, %v921
    %v923 = vrot.slane %v922, 1
    %v924 = vadd.f32 %v922, %v923
    %v925 = vsel %vm882, %v85, 0.0
    %v926 = vrot.slane %v925, 4
    %v927 = vadd.f32 %v925, %v926
    %v928 = vrot.slane %v927, 2
    %v929 = vadd.f32 %v927, %v928
    %v930 = vrot.slane %v929, 1
    %v931 = vadd.f32 %v929, %v930
    %v932 = vsel %vm882, %v86, 0.0
    %v933 = vrot.slane %v932, 4
    %v934 = vadd.f32 %v932, %v933
    %v935 = vrot.slane %v934, 2
    %v936 = vadd.f32 %v934, %v935
    %v937 = vrot.slane %v936, 1
    %v938 = vadd.f32 %v936, %v937
    %v939 = vsel %vm882, %v87, 0.0
    %v940 = vrot.slane %v939, 4
    %v941 = vadd.f32 %v939, %v940
    %v942 = vrot.slane %v941, 2
    %v943 = vadd.f32 %v941, %v942
    %v944 = vrot.slane %v943, 1
    %v945 = vadd.f32 %v943, %v944
    %v946 = vsel %vm882, %v88, 0.0
    %v947 = vrot.slane %v946, 4
    %v948 = vadd.f32 %v946, %v947
    %v949 = vrot.slane %v948, 2
    %v950 = vadd.f32 %v948, %v949
    %v951 = vrot.slane %v950, 1
    %v952 = vadd.f32 %v950, %v951
    %v953 = vsel %vm882, %v89, 0.0
    %v954 = vrot.slane %v953, 4
    %v955 = vadd.f32 %v953, %v954
    %v956 = vrot.slane %v955, 2
    %v957 = vadd.f32 %v955, %v956
    %v958 = vrot.slane %v957, 1
    %v959 = vadd.f32 %v957, %v958
    %v960 = vsel %vm882, %v90, 0.0
    %v961 = vrot.slane %v960, 4
    %v962 = vadd.f32 %v960, %v961
    %v963 = vrot.slane %v962, 2
    %v964 = vadd.f32 %v962, %v963
    %v965 = vrot.slane %v964, 1
    %v966 = vadd.f32 %v964, %v965
    %v967 = vsel %vm882, %v91, 0.0
    %v968 = vrot.slane %v967, 4
    %v969 = vadd.f32 %v967, %v968
    %v970 = vrot.slane %v969, 2
    %v971 = vadd.f32 %v969, %v970
    %v972 = vrot.slane %v971, 1
    %v973 = vadd.f32 %v971, %v972
    %v974 = vsel %vm882, %v92, 0.0
    %v975 = vrot.slane %v974, 4
    %v976 = vadd.f32 %v974, %v975
    %v977 = vrot.slane %v976, 2
    %v978 = vadd.f32 %v976, %v977
    %v979 = vrot.slane %v978, 1
    %v980 = vadd.f32 %v978, %v979
    %v981 = vsel %vm882, %v93, 0.0
    %v982 = vrot.slane %v981, 4
    %v983 = vadd.f32 %v981, %v982
    %v984 = vrot.slane %v983, 2
    %v985 = vadd.f32 %v983, %v984
    %v986 = vrot.slane %v985, 1
    %v987 = vadd.f32 %v985, %v986
    %v988 = vsel %vm882, %v94, 0.0
    %v989 = vrot.slane %v988, 4
    %v990 = vadd.f32 %v988, %v989
    %v991 = vrot.slane %v990, 2
    %v992 = vadd.f32 %v990, %v991
    %v993 = vrot.slane %v992, 1
    %v994 = vadd.f32 %v992, %v993
    %v995 = vpack.c.bf16 %v776, %v776
    %v996 = vpack.c.bf16 %v783, %v783
    %v997 = vpack.c.bf16 %v790, %v790
    %v998 = vpack.c.bf16 %v797, %v797
    %v999 = vpack.c.bf16 %v804, %v804
    %v1000 = vpack.c.bf16 %v811, %v811
    %v1001 = vpack.c.bf16 %v818, %v818
    %v1002 = vpack.c.bf16 %v825, %v825
    %v1003 = vpack.c.bf16 %v832, %v832
    %v1004 = vpack.c.bf16 %v839, %v839
    %v1005 = vpack.c.bf16 %v846, %v846
    %v1006 = vpack.c.bf16 %v853, %v853
    %v1007 = vpack.c.bf16 %v860, %v860
    %v1008 = vpack.c.bf16 %v867, %v867
    %v1009 = vpack.c.bf16 %v874, %v874
    %v1010 = vpack.c.bf16 %v881, %v881
    %1012 = vset.pattern.permute.xlu0 0
    %1013 = vperm.xlu0 %1012, %v889
    %v1014 = vpop.permute.xlu0 %1013
    %1017 = vset.pattern.permute.xlu0 0
    %1018 = vperm.xlu0 %1017, %v896
    %v1019 = vpop.permute.xlu0 %1018
    %1022 = vset.pattern.permute.xlu0 0
    %1023 = vperm.xlu0 %1022, %v903
    %v1024 = vpop.permute.xlu0 %1023
    %1027 = vset.pattern.permute.xlu0 0
    %1028 = vperm.xlu0 %1027, %v910
    %v1029 = vpop.permute.xlu0 %1028
    %1032 = vset.pattern.permute.xlu0 0
    %1033 = vperm.xlu0 %1032, %v917
    %v1034 = vpop.permute.xlu0 %1033
    %1037 = vset.pattern.permute.xlu0 0
    %1038 = vperm.xlu0 %1037, %v924
    %v1039 = vpop.permute.xlu0 %1038
    %1042 = vset.pattern.permute.xlu0 0
    %1043 = vperm.xlu0 %1042, %v931
    %v1044 = vpop.permute.xlu0 %1043
    %1047 = vset.pattern.permute.xlu0 0
    %1048 = vperm.xlu0 %1047, %v938
    %v1049 = vpop.permute.xlu0 %1048
    %1052 = vset.pattern.permute.xlu0 0
    %1053 = vperm.xlu0 %1052, %v945
    %v1054 = vpop.permute.xlu0 %1053
    %1057 = vset.pattern.permute.xlu0 0
    %1058 = vperm.xlu0 %1057, %v952
    %v1059 = vpop.permute.xlu0 %1058
    %1062 = vset.pattern.permute.xlu0 0
    %1063 = vperm.xlu0 %1062, %v959
    %v1064 = vpop.permute.xlu0 %1063
    %1067 = vset.pattern.permute.xlu0 0
    %1068 = vperm.xlu0 %1067, %v966
    %v1069 = vpop.permute.xlu0 %1068
    %1072 = vset.pattern.permute.xlu0 0
    %1073 = vperm.xlu0 %1072, %v973
    %v1074 = vpop.permute.xlu0 %1073
    %1077 = vset.pattern.permute.xlu0 0
    %1078 = vperm.xlu0 %1077, %v980
    %v1079 = vpop.permute.xlu0 %1078
    %1082 = vset.pattern.permute.xlu0 0
    %1083 = vperm.xlu0 %1082, %v987
    %v1084 = vpop.permute.xlu0 %1083
    %1087 = vset.pattern.permute.xlu0 0
    %1088 = vperm.xlu0 %1087, %v994
    %v1089 = vpop.permute.xlu0 %1088
    %v1092 = vlaneseq
    %v1093 = vshrl.u32 %v1092, 7
    %v1094 = vsub.s32 0, %v1093
    %v1095 = vrot.slane %v105, %v1094
    %v1097 = vmul.f32 %v1014, %v1095
    %v1098 = vmul.f32 %v1019, %v1095
    %v1099 = vmul.f32 %v1024, %v1095
    %v1100 = vmul.f32 %v1029, %v1095
    %v1101 = vmul.f32 %v1034, %v1095
    %v1102 = vmul.f32 %v1039, %v1095
    %v1103 = vmul.f32 %v1044, %v1095
    %v1104 = vmul.f32 %v1049, %v1095
    %v1105 = vmul.f32 %v1054, %v1095
    %v1106 = vmul.f32 %v1059, %v1095
    %v1107 = vmul.f32 %v1064, %v1095
    %v1108 = vmul.f32 %v1069, %v1095
    %v1109 = vmul.f32 %v1074, %v1095
    %v1110 = vmul.f32 %v1079, %v1095
    %v1111 = vmul.f32 %v1084, %v1095
    %v1112 = vmul.f32 %v1089, %v1095
    %v1129 = vunpack.c.l.b16 %v995
    %v1130 = vunpack.c.l.b16 %v996
    %v1131 = vunpack.c.l.b16 %v997
    %v1132 = vunpack.c.l.b16 %v998
    %v1133 = vunpack.c.l.b16 %v999
    %v1134 = vunpack.c.l.b16 %v1000
    %v1135 = vunpack.c.l.b16 %v1001
    %v1136 = vunpack.c.l.b16 %v1002
    %v1137 = vunpack.c.l.b16 %v1003
    %v1138 = vunpack.c.l.b16 %v1004
    %v1139 = vunpack.c.l.b16 %v1005
    %v1140 = vunpack.c.l.b16 %v1006
    %v1141 = vunpack.c.l.b16 %v1007
    %v1142 = vunpack.c.l.b16 %v1008
    %v1143 = vunpack.c.l.b16 %v1009
    %v1144 = vunpack.c.l.b16 %v1010
    %vm1145 = vcmask 1041409
    %v1146 = vsel %vm1145, %v1130, %v1129
    %vm1147 = vcmask 1042434
    %v1148 = vsel %vm1147, %v1131, %v1146
    %vm1149 = vcmask 1043459
    %v1150 = vsel %vm1149, %v1132, %v1148
    %vm1151 = vcmask 1044484
    %v1152 = vsel %vm1151, %v1133, %v1150
    %vm1153 = vcmask 1045509
    %v1154 = vsel %vm1153, %v1134, %v1152
    %vm1155 = vcmask 1046534
    %v1156 = vsel %vm1155, %v1135, %v1154
    %vm1157 = vcmask 1047559
    %v1158 = vsel %vm1157, %v1136, %v1156
    %v1159 = vsel %vm1145, %v1138, %v1137
    %v1160 = vsel %vm1147, %v1139, %v1159
    %v1161 = vsel %vm1149, %v1140, %v1160
    %v1162 = vsel %vm1151, %v1141, %v1161
    %v1163 = vsel %vm1153, %v1142, %v1162
    %v1164 = vsel %vm1155, %v1143, %v1163
    %v1165 = vsel %vm1157, %v1144, %v1164
    %v1166 = vpack.c.b16 %v1165, %v1158
    %v1169 = vunpack.c.l.b16 %v103
    %v1170 = vunpack.c.l.b16 %v104
    %v1171 = vpack.c.b16 %v1170, %v1169
    %v1189 = vrot.slane %v1098, 7
    %v1190 = vsel %vm1145, %v1189, %v1097
    %v1191 = vrot.slane %v1099, 6
    %v1192 = vsel %vm1147, %v1191, %v1190
    %v1193 = vrot.slane %v1100, 5
    %v1194 = vsel %vm1149, %v1193, %v1192
    %v1195 = vrot.slane %v1101, 4
    %v1196 = vsel %vm1151, %v1195, %v1194
    %v1197 = vrot.slane %v1102, 3
    %v1198 = vsel %vm1153, %v1197, %v1196
    %v1199 = vrot.slane %v1103, 2
    %v1200 = vsel %vm1155, %v1199, %v1198
    %v1201 = vrot.slane %v1104, 1
    %v1202 = vsel %vm1157, %v1201, %v1200
    %v1203 = vrot.slane %v1106, 7
    %v1204 = vsel %vm1145, %v1203, %v1105
    %v1205 = vrot.slane %v1107, 6
    %v1206 = vsel %vm1147, %v1205, %v1204
    %v1207 = vrot.slane %v1108, 5
    %v1208 = vsel %vm1149, %v1207, %v1206
    %v1209 = vrot.slane %v1109, 4
    %v1210 = vsel %vm1151, %v1209, %v1208
    %v1211 = vrot.slane %v1110, 3
    %v1212 = vsel %vm1153, %v1211, %v1210
    %v1213 = vrot.slane %v1111, 2
    %v1214 = vsel %vm1155, %v1213, %v1212
    %v1215 = vrot.slane %v1112, 1
    %v1216 = vsel %vm1157, %v1215, %v1214
    %v1220 = vsel %vm536, %v1166, 0
    %1222 = vmatprep.subr.bf16.mxu0 0
    %1223 = vmatpush1.bf16.msra.mxu0 %v1171
    %1224 = vmatprep.subr.bf16.mxu0 0
    %1225 = vmatpush1.bf16.msra.mxu0 0
    %1226 = vmatprep.subr.bf16.mxu0 0
    %1227 = vmatpush1.bf16.msra.mxu0 0
    %1228 = vmatprep.subr.bf16.mxu0 0
    %1229 = vmatpush1.bf16.msra.mxu0 0
    %1230 = vmatprep.subr.bf16.mxu0 0
    %1231 = vmatpush1.bf16.msra.mxu0 0
    %1232 = vmatprep.subr.bf16.mxu0 0
    %1233 = vmatpush1.bf16.msra.mxu0 0
    %1234 = vmatprep.subr.bf16.mxu0 0
    %1235 = vmatpush1.bf16.msra.mxu0 0
    %1236 = vmatprep.subr.bf16.mxu0 0
    %1237 = vmatpush1.bf16.msra.mxu0 0
    %1238 = vmatprep.subr.bf16.mxu0 0
    %1239 = vmatpush1.bf16.msra.mxu0 0
    %1240 = vmatprep.subr.bf16.mxu0 0
    %1241 = vmatpush1.bf16.msra.mxu0 0
    %1242 = vmatprep.subr.bf16.mxu0 0
    %1243 = vmatpush1.bf16.msra.mxu0 0
    %1244 = vmatprep.subr.bf16.mxu0 0
    %1245 = vmatpush1.bf16.msra.mxu0 0
    %1246 = vmatprep.subr.bf16.mxu0 0
    %1247 = vmatpush1.bf16.msra.mxu0 0
    %1248 = vmatprep.subr.bf16.mxu0 0
    %1249 = vmatpush1.bf16.msra.mxu0 0
    %1250 = vmatprep.subr.bf16.mxu0 0
    %1251 = vmatpush1.bf16.msra.mxu0 0
    %1252 = vmatprep.subr.bf16.mxu0 0
    %1253 = vmatpush1.bf16.msra.mxu0 0
    %1254 = vmatprep.mubr.bf16.mxu0 0
    %1255 = vmatmul.mubr.bf16.gmra.mrb[0].mxu0 %v1220
    %v1256 = vpop.f32.mrb[0].mxu0
    %v1257 = vadd.f32 %v1202, %v1256
    %v1258 = vpop.f32.mrb[0].mxu0
    %v1259 = vpop.f32.mrb[0].mxu0
    %v1260 = vadd.f32 %v1216, %v1259
    %v1261 = vpop.f32.mrb[0].mxu0
    %1262 = vdwg.mxu0
    %v1263 = vld [vmem:[%s1] sm:$0xff]
    %v1264 = vld [vmem:[%s1 + $0x8] sm:$0xff]
    %v1265 = vld [vmem:[%s11] sm:$0x7]
    %v1266 = vld [vmem:[%s12] sm:$0xf]
    %v1267 = vld [vmem:[%s13] sm:$0x1]
    %v1268 = vld [vmem:[%s14] sm:$0xf]
    %v1269 = vld [vmem:[%s14 + $0x4] sm:$0xf]
    %v1270 = vld [vmem:[%s15] sm:$0x1]
    %v1271 = vld [vmem:[%s16] sm:$0xf]
    %v1272 = vld [vmem:[%s16 + $0x4] sm:$0xf]
    %v1273 = vld [vmem:[%s17] sm:$0x1]
    %v1274 = vpack.c.bf16 %v1264, %v1263
    %v1275 = vpack.c.bf16 %v1260, %v1257
    %vm1276 = vcmask 64512
    %v1278 = vsel %vm1276, %v1275, 0
    %vm1280 = vcmask 1043456
    %v1282 = vsel %vm1280, %v1266, 0
    %1284 = vmatprep.subr.bf16.mxu0 0
    %1285 = vmatpush1.bf16.msra.mxu0 %v1282
    %1286 = vmatprep.subr.bf16.mxu0 0
    %1287 = vmatpush1.bf16.msra.mxu0 0
    %1288 = vmatprep.subr.bf16.mxu0 0
    %1289 = vmatpush1.bf16.msra.mxu0 0
    %1290 = vmatprep.subr.bf16.mxu0 0
    %1291 = vmatpush1.bf16.msra.mxu0 0
    %1292 = vmatprep.subr.bf16.mxu0 0
    %1293 = vmatpush1.bf16.msra.mxu0 0
    %1294 = vmatprep.subr.bf16.mxu0 0
    %1295 = vmatpush1.bf16.msra.mxu0 0
    %1296 = vmatprep.subr.bf16.mxu0 0
    %1297 = vmatpush1.bf16.msra.mxu0 0
    %1298 = vmatprep.subr.bf16.mxu0 0
    %1299 = vmatpush1.bf16.msra.mxu0 0
    %1300 = vmatprep.subr.bf16.mxu0 0
    %1301 = vmatpush1.bf16.msra.mxu0 0
    %1302 = vmatprep.subr.bf16.mxu0 0
    %1303 = vmatpush1.bf16.msra.mxu0 0
    %1304 = vmatprep.subr.bf16.mxu0 0
    %1305 = vmatpush1.bf16.msra.mxu0 0
    %1306 = vmatprep.subr.bf16.mxu0 0
    %1307 = vmatpush1.bf16.msra.mxu0 0
    %1308 = vmatprep.subr.bf16.mxu0 0
    %1309 = vmatpush1.bf16.msra.mxu0 0
    %1310 = vmatprep.subr.bf16.mxu0 0
    %1311 = vmatpush1.bf16.msra.mxu0 0
    %1312 = vmatprep.subr.bf16.mxu0 0
    %1313 = vmatpush1.bf16.msra.mxu0 0
    %1314 = vmatprep.subr.bf16.mxu0 0
    %1315 = vmatpush1.bf16.msra.mxu0 0
    %1316 = vmatprep.mubr.bf16.mxu0 0
    %1317 = vmatmul.mubr.bf16.gmra.mrb[0].mxu0 %v1278
    %v1318 = vpop.f32.mrb[0].mxu0
    %v1319 = vadd.f32 0.0, %v1318
    %v1320 = vpop.f32.mrb[0].mxu0
    %v1321 = vpop.f32.mrb[0].mxu0
    %v1322 = vadd.f32 0.0, %v1321
    %v1323 = vpop.f32.mrb[0].mxu0
    %1324 = vdwg.mxu0
    %vm1325 = vcmask 48128
    %v1327 = vsel %vm1325, %v1274, 0
    %vm1329 = vcmask 1042432
    %v1331 = vsel %vm1329, %v1265, 0
    %1333 = vmatprep.subr.bf16.mxu0 0
    %1334 = vmatpush1.bf16.msra.mxu0 %v1331
    %1335 = vmatprep.subr.bf16.mxu0 0
    %1336 = vmatpush1.bf16.msra.mxu0 0
    %1337 = vmatprep.subr.bf16.mxu0 0
    %1338 = vmatpush1.bf16.msra.mxu0 0
    %1339 = vmatprep.subr.bf16.mxu0 0
    %1340 = vmatpush1.bf16.msra.mxu0 0
    %1341 = vmatprep.subr.bf16.mxu0 0
    %1342 = vmatpush1.bf16.msra.mxu0 0
    %1343 = vmatprep.subr.bf16.mxu0 0
    %1344 = vmatpush1.bf16.msra.mxu0 0
    %1345 = vmatprep.subr.bf16.mxu0 0
    %1346 = vmatpush1.bf16.msra.mxu0 0
    %1347 = vmatprep.subr.bf16.mxu0 0
    %1348 = vmatpush1.bf16.msra.mxu0 0
    %1349 = vmatprep.subr.bf16.mxu0 0
    %1350 = vmatpush1.bf16.msra.mxu0 0
    %1351 = vmatprep.subr.bf16.mxu0 0
    %1352 = vmatpush1.bf16.msra.mxu0 0
    %1353 = vmatprep.subr.bf16.mxu0 0
    %1354 = vmatpush1.bf16.msra.mxu0 0
    %1355 = vmatprep.subr.bf16.mxu0 0
    %1356 = vmatpush1.bf16.msra.mxu0 0
    %1357 = vmatprep.subr.bf16.mxu0 0
    %1358 = vmatpush1.bf16.msra.mxu0 0
    %1359 = vmatprep.subr.bf16.mxu0 0
    %1360 = vmatpush1.bf16.msra.mxu0 0
    %1361 = vmatprep.subr.bf16.mxu0 0
    %1362 = vmatpush1.bf16.msra.mxu0 0
    %1363 = vmatprep.subr.bf16.mxu0 0
    %1364 = vmatpush1.bf16.msra.mxu0 0
    %1365 = vmatprep.mubr.bf16.mxu0 0
    %1366 = vmatmul.mubr.bf16.gmra.mrb[0].mxu0 %v1327
    %v1367 = vpop.f32.mrb[0].mxu0
    %v1368 = vadd.f32 %v1319, %v1367
    %v1369 = vpop.f32.mrb[0].mxu0
    %v1370 = vpop.f32.mrb[0].mxu0
    %v1371 = vadd.f32 %v1322, %v1370
    %v1372 = vpop.f32.mrb[0].mxu0
    %1373 = vdwg.mxu0
    %v1375 = vlaneseq
    %v1376 = vshrl.u32 %v1375, 7
    %v1377 = vsub.s32 0, %v1376
    %v1378 = vrot.slane %v1267, %v1377
    %v1380 = vadd.f32 %v1368, %v1378
    %v1381 = vadd.f32 %v1371, %v1378
    %v1382 = vmax.f32 %v1380, 0.0
    %v1383 = vmax.f32 %v1381, 0.0
    %v1384 = vpack.c.bf16 %v1383, %v1382
    %v1386 = vlaneseq
    %v1387 = vshrl.u32 %v1386, 7
    %v1388 = vsub.s32 0, %v1387
    %v1389 = vrot.slane %v1270, %v1388
    %v1393 = vunpack.c.l.b16 %v1268
    %v1394 = vunpack.c.l.b16 %v1269
    %v1395 = vpack.c.b16 %v1394, %v1393
    %v1398 = vsel %vm536, %v1384, 0
    %1400 = vmatprep.subr.bf16.mxu0 0
    %1401 = vmatpush1.bf16.msra.mxu0 %v1395
    %1402 = vmatprep.subr.bf16.mxu0 0
    %1403 = vmatpush1.bf16.msra.mxu0 0
    %1404 = vmatprep.subr.bf16.mxu0 0
    %1405 = vmatpush1.bf16.msra.mxu0 0
    %1406 = vmatprep.subr.bf16.mxu0 0
    %1407 = vmatpush1.bf16.msra.mxu0 0
    %1408 = vmatprep.subr.bf16.mxu0 0
    %1409 = vmatpush1.bf16.msra.mxu0 0
    %1410 = vmatprep.subr.bf16.mxu0 0
    %1411 = vmatpush1.bf16.msra.mxu0 0
    %1412 = vmatprep.subr.bf16.mxu0 0
    %1413 = vmatpush1.bf16.msra.mxu0 0
    %1414 = vmatprep.subr.bf16.mxu0 0
    %1415 = vmatpush1.bf16.msra.mxu0 0
    %1416 = vmatprep.subr.bf16.mxu0 0
    %1417 = vmatpush1.bf16.msra.mxu0 0
    %1418 = vmatprep.subr.bf16.mxu0 0
    %1419 = vmatpush1.bf16.msra.mxu0 0
    %1420 = vmatprep.subr.bf16.mxu0 0
    %1421 = vmatpush1.bf16.msra.mxu0 0
    %1422 = vmatprep.subr.bf16.mxu0 0
    %1423 = vmatpush1.bf16.msra.mxu0 0
    %1424 = vmatprep.subr.bf16.mxu0 0
    %1425 = vmatpush1.bf16.msra.mxu0 0
    %1426 = vmatprep.subr.bf16.mxu0 0
    %1427 = vmatpush1.bf16.msra.mxu0 0
    %1428 = vmatprep.subr.bf16.mxu0 0
    %1429 = vmatpush1.bf16.msra.mxu0 0
    %1430 = vmatprep.subr.bf16.mxu0 0
    %1431 = vmatpush1.bf16.msra.mxu0 0
    %1432 = vmatprep.mubr.bf16.mxu0 0
    %1433 = vmatmul.mubr.bf16.gmra.mrb[0].mxu0 %v1398
    %v1434 = vpop.f32.mrb[0].mxu0
    %v1435 = vadd.f32 %v1389, %v1434
    %v1436 = vpop.f32.mrb[0].mxu0
    %v1437 = vpop.f32.mrb[0].mxu0
    %v1438 = vadd.f32 %v1389, %v1437
    %v1439 = vpop.f32.mrb[0].mxu0
    %1440 = vdwg.mxu0
    %v1441 = vmax.f32 %v1435, 0.0
    %v1442 = vmax.f32 %v1438, 0.0
    %v1443 = vpack.c.bf16 %v1442, %v1441
    %v1445 = vlaneseq
    %v1446 = vshrl.u32 %v1445, 7
    %v1447 = vsub.s32 0, %v1446
    %v1448 = vrot.slane %v1273, %v1447
    %v1452 = vunpack.c.l.b16 %v1271
    %v1453 = vunpack.c.l.b16 %v1272
    %v1454 = vpack.c.b16 %v1453, %v1452
    %v1457 = vsel %vm536, %v1443, 0
    %1459 = vmatprep.subr.bf16.mxu0 0
    %1460 = vmatpush1.bf16.msra.mxu0 %v1454
    %1461 = vmatprep.subr.bf16.mxu0 0
    %1462 = vmatpush1.bf16.msra.mxu0 0
    %1463 = vmatprep.subr.bf16.mxu0 0
    %1464 = vmatpush1.bf16.msra.mxu0 0
    %1465 = vmatprep.subr.bf16.mxu0 0
    %1466 = vmatpush1.bf16.msra.mxu0 0
    %1467 = vmatprep.subr.bf16.mxu0 0
    %1468 = vmatpush1.bf16.msra.mxu0 0
    %1469 = vmatprep.subr.bf16.mxu0 0
    %1470 = vmatpush1.bf16.msra.mxu0 0
    %1471 = vmatprep.subr.bf16.mxu0 0
    %1472 = vmatpush1.bf16.msra.mxu0 0
    %1473 = vmatprep.subr.bf16.mxu0 0
    %1474 = vmatpush1.bf16.msra.mxu0 0
    %1475 = vmatprep.subr.bf16.mxu0 0
    %1476 = vmatpush1.bf16.msra.mxu0 0
    %1477 = vmatprep.subr.bf16.mxu0 0
    %1478 = vmatpush1.bf16.msra.mxu0 0
    %1479 = vmatprep.subr.bf16.mxu0 0
    %1480 = vmatpush1.bf16.msra.mxu0 0
    %1481 = vmatprep.subr.bf16.mxu0 0
    %1482 = vmatpush1.bf16.msra.mxu0 0
    %1483 = vmatprep.subr.bf16.mxu0 0
    %1484 = vmatpush1.bf16.msra.mxu0 0
    %1485 = vmatprep.subr.bf16.mxu0 0
    %1486 = vmatpush1.bf16.msra.mxu0 0
    %1487 = vmatprep.subr.bf16.mxu0 0
    %1488 = vmatpush1.bf16.msra.mxu0 0
    %1489 = vmatprep.subr.bf16.mxu0 0
    %1490 = vmatpush1.bf16.msra.mxu0 0
    %1491 = vmatprep.mubr.bf16.mxu0 0
    %1492 = vmatmul.mubr.bf16.gmra.mrb[0].mxu0 %v1457
    %v1493 = vpop.f32.mrb[0].mxu0
    %v1494 = vadd.f32 %v1448, %v1493
    %v1495 = vpop.f32.mrb[0].mxu0
    %v1496 = vpop.f32.mrb[0].mxu0
    %v1497 = vadd.f32 %v1448, %v1496
    %v1498 = vpop.f32.mrb[0].mxu0
    %1499 = vdwg.mxu0
    %vm1500 = vcmask 97280
    %1501 = vst.msk [vmem:[#allocation2] sm:$0xff] %vm1500, %v1494
    %1502 = vst.msk [vmem:[#allocation2 + $0x8] sm:$0xff] %vm1500, %v1497
    // Predicated region
    $region74: #{tpu_custom_call.1} parent=1 // pred_check
      _
    $region75: #{tpu_custom_call.1} parent=1 // pred_check_branch
      %1504 = sbr.rel (0) target = $region77
    $region76: #{tpu_custom_call.1} parent=1 // pred_region
      %s1506 = ssub.s32 256, 256
      %1507 = vsyncadd [#allocation3], %s1506
      %s1508 = sshll.u32 [#allocation2], 4
      %s1509 = int_to_ptr.vmem [resolvable:$true] %s1508
      %1514 = dma.vmem_to_hbm [thread:$0]  %s1509, 256, %s18, [#allocation3], 128, 128, 8
    $region77: #{tpu_custom_call.1} parent=1 // pred_fallthru
      _
    // Predicated region
    $region78: #{tpu_custom_call.1} parent=1 // pred_check
      _
    $region79: #{tpu_custom_call.1} parent=1 // pred_check_branch
      %1516 = sbr.rel (0) target = $region81
    $region80: #{tpu_custom_call.1} parent=1 // pred_region
      %1517 = dma.done [#allocation3], 256
    $region81: #{tpu_custom_call.1} parent=1 // pred_fallthru
      _
    %1518 = vsyncpa [#allocation3], 1

</llo_original>
